<compile_context>
chip_gen: v5e
topology: v5e:2x2
jax: 0.10.0
libtpu: 0.0.40
codegen_flags: <defaults>
</compile_context>

<pallas_src>
import functools

import jax
import jax.numpy as jnp
from jax.experimental import pallas as pl
from jax.experimental.pallas import tpu as pltpu


# -----------------------------------------------------------------------------
# Generation-aware VMEM budget (review: ~96-112 MiB on v5e/v6e, ~48-56 on v7x)
# -----------------------------------------------------------------------------
@functools.lru_cache(maxsize=None)
def _vmem_limit_bytes():
    budget = 48 * 1024 * 1024                     # safe on 64-MiB (v7x) parts
    try:
        cap = int(pltpu.get_tpu_info().vmem_capacity_bytes)
        if cap >= 96 * 1024 * 1024:               # 128-MiB parts (v5e / v6e)
            budget = 96 * 1024 * 1024
    except Exception:                             # query unavailable -> fallback
        pass
    return budget


def _choose_k_tile(k, max_tile):
    """Full K if it fits, else the largest multiple-of-128 divisor <= max_tile.
    Raises (instead of silently blowing the VMEM budget) if none exists."""
    if k <= max_tile:
        return k
    for t in range(max_tile, 0, -128):
        if k % t == 0:
            return t
    raise ValueError(
        f"K={k} has no multiple-of-128 divisor <= {max_tile}; pad K upstream.")


# -----------------------------------------------------------------------------
# Pallas kernel 1: conv-as-GEMM (transposed form), fused bias + ReLU
#   out (OC, M) = relu( W (OC, K) @ cols (K, M) + b (OC, 1) )
# Output lane dim is the large M = B*OH*OW axis -> lane-dense stores, and the
# (OC, B, OH, OW) result is directly the next layer's (C, B, H, W) input.
# -----------------------------------------------------------------------------
def _conv_gemm_kernel(w_ref, c_ref, b_ref, o_ref, acc_ref, *, relu):
    k = pl.program_id(1)

    @pl.when(k == 0)
    def _init():
        acc_ref[...] = jnp.zeros_like(acc_ref)

    acc_ref[...] += jnp.dot(w_ref[...], c_ref[...],
                            preferred_element_type=jnp.float32)

    @pl.when(k == pl.num_programs(1) - 1)
    def _finalize():
        y = acc_ref[...] + b_ref[...]          # (OC, TM) + (OC, 1) lane-broadcast
        if relu:
            y = jnp.maximum(y, 0.0)
        o_ref[...] = y.astype(o_ref.dtype)


def conv_gemm(w, cols, b_col, *, relu=True, out_dtype=jnp.bfloat16,
              tm=2048, max_tk=1024):
    """w: (OC, K) bf16, cols: (K, M) bf16, b_col: (OC, 1) f32 -> (OC, M)."""
    oc, k = w.shape
    k2, m = cols.shape
    assert k == k2
    tm_eff = m if m <= tm else tm              # full-dim block when M is small
    tk = _choose_k_tile(k, max_tk)
    grid = (pl.cdiv(m, tm_eff), k // tk)

    cost = pl.CostEstimate(
        flops=2 * oc * k * m,
        transcendentals=0,
        bytes_accessed=(oc * k + k * m + oc * m) * 2 + oc * 4)

    kernel = functools.partial(_conv_gemm_kernel, relu=relu)
    return pl.pallas_call(
        kernel,
        out_shape=jax.ShapeDtypeStruct((oc, m), out_dtype),
        grid=grid,
        in_specs=[
            pl.BlockSpec((oc, tk), lambda i, kk: (0, kk)),
            pl.BlockSpec((tk, tm_eff), lambda i, kk: (kk, i)),
            pl.BlockSpec((oc, 1), lambda i, kk: (0, 0)),
        ],
        out_specs=pl.BlockSpec((oc, tm_eff), lambda i, kk: (0, i)),
        scratch_shapes=[pltpu.VMEM((oc, tm_eff), jnp.float32)],
        compiler_params=pltpu.CompilerParams(
            dimension_semantics=("parallel", "arbitrary"),
            vmem_limit_bytes=_vmem_limit_bytes(),
        ),
        cost_estimate=cost,
    )(w, cols, b_col)


# -----------------------------------------------------------------------------
# Pallas kernel 2: fused FC tail  (fc1 + ReLU + fc2 in one pallas_call)
#   out (B, Dpad) = relu( X (B, F) @ W1 (F, 512) + b1 ) @ W2 (512, Dpad) + b2
# D is zero-padded to 128 in preprocess_params so the output store is
# lane-dense; the caller slices back to the true output_dim.
# -----------------------------------------------------------------------------
def _fc_fused_kernel(x_ref, w1_ref, b1_ref, w2_ref, b2_ref, o_ref, acc_ref):
    k = pl.program_id(1)

    @pl.when(k == 0)
    def _init():
        acc_ref[...] = jnp.zeros_like(acc_ref)

    acc_ref[...] += jnp.dot(x_ref[...], w1_ref[...],
                            preferred_element_type=jnp.float32)

    @pl.when(k == pl.num_programs(1) - 1)
    def _finalize():
        h = jnp.maximum(acc_ref[...] + b1_ref[...], 0.0)          # (TB, 512) f32
        y = jnp.dot(h.astype(w2_ref.dtype), w2_ref[...],
                    preferred_element_type=jnp.float32)
        o_ref[...] = (y + b2_ref[...]).astype(o_ref.dtype)


def fc_fused(x, w1, b1, w2, b2, *, tb=512, max_tk=1024):
    """x: (B, F) bf16, w1: (F, H) bf16, b1: (1, H) f32, w2: (H, Dpad) bf16,
    b2: (1, Dpad) f32 -> (B, Dpad) f32."""
    bsz, f = x.shape
    f2, h = w1.shape
    h2, d = w2.shape
    assert f == f2 and h == h2
    tb_eff = bsz if bsz <= tb else tb
    tf = _choose_k_tile(f, max_tk)
    grid = (pl.cdiv(bsz, tb_eff), f // tf)

    cost = pl.CostEstimate(
        flops=2 * bsz * f * h + 2 * bsz * h * d,
        transcendentals=0,
        bytes_accessed=(bsz * f + f * h + h * d) * 2 + (h + d) * 4 + bsz * d * 4)

    return pl.pallas_call(
        _fc_fused_kernel,
        out_shape=jax.ShapeDtypeStruct((bsz, d), jnp.float32),
        grid=grid,
        in_specs=[
            pl.BlockSpec((tb_eff, tf), lambda i, kk: (i, kk)),
            pl.BlockSpec((tf, h), lambda i, kk: (kk, 0)),
            pl.BlockSpec((1, h), lambda i, kk: (0, 0)),
            pl.BlockSpec((h, d), lambda i, kk: (0, 0)),
            pl.BlockSpec((1, d), lambda i, kk: (0, 0)),
        ],
        out_specs=pl.BlockSpec((tb_eff, d), lambda i, kk: (i, 0)),
        scratch_shapes=[pltpu.VMEM((tb_eff, h), jnp.float32)],
        compiler_params=pltpu.CompilerParams(
            dimension_semantics=("parallel", "arbitrary"),
            vmem_limit_bytes=_vmem_limit_bytes(),
        ),
        cost_estimate=cost,
    )(x, w1, b1, w2, b2)


# -----------------------------------------------------------------------------
# im2col in channels-first-of-batch layout: x (C, B, H, W) -> cols (C*KH*KW, M)
# Row order (c, kh, kw) matches torch_weight.reshape(OC, -1) column order.
# TODO(synk): fold this gather into the conv kernel (per-M-tile strided ref /
# DMA loads) to remove the KH*KW/stride^2 HBM inflation of the cols array.
# -----------------------------------------------------------------------------
def _im2col_cfirst(x, kh, kw, stride):
    c, b, hh, ww = x.shape
    oh = (hh - kh) // stride + 1
    ow = (ww - kw) // stride + 1
    patches = [
        x[:, :, i:i + stride * oh:stride, j:j + stride * ow:stride]
        for i in range(kh) for j in range(kw)
    ]                                                   # each (C, B, OH, OW)
    cols = jnp.stack(patches, axis=1)                   # (C, KH*KW, B, OH, OW)
    cols = cols.reshape(c * kh * kw, b * oh * ow)
    return cols, oh, ow


# -----------------------------------------------------------------------------
# NatureCNN: parameters (PyTorch layout), one-time preprocessing, forward
# -----------------------------------------------------------------------------
def conv_out_hw(h, w):
    h = (h - 8) // 4 + 1
    w = (w - 8) // 4 + 1
    h = (h - 4) // 2 + 1
    w = (w - 4) // 2 + 1
    h = (h - 3) // 1 + 1
    w = (w - 3) // 1 + 1
    return h, w


def init_nature_cnn_params(key, input_shape, output_dim):
    c, h, w = input_shape
    h3, w3 = conv_out_hw(h, w)
    n_flatten = 64 * h3 * w3
    ks = jax.random.split(key, 10)

    def norm(k, shape, scale=0.05):
        return scale * jax.random.normal(k, shape, dtype=jnp.float32)

    params = {
        "w1": norm(ks[0], (32, c, 8, 8)),
        "b1": norm(ks[1], (32,)),
        "w2": norm(ks[2], (64, 32, 4, 4)),
        "b2": norm(ks[3], (64,)),
        "w3": norm(ks[4], (64, 64, 3, 3)),
        "b3": norm(ks[5], (64,)),
        # nn.Linear stores weight as (out, in)
        "wl1": norm(ks[6], (512, n_flatten)),
        "bl1": norm(ks[7], (512,)),
        "wl2": norm(ks[8], (output_dim, 512)),
        "bl2": norm(ks[9], (output_dim,)),
    }
    return params, n_flatten


def preprocess_params(params):
    """One-time layout work: reshape/transpose/pad weights, cast to bf16.
    Done outside the jitted forward so no per-step weight transposes remain."""
    def conv_w(w):
        return w.reshape(w.shape[0], -1).astype(jnp.bfloat16)     # (OC, IC*KH*KW)

    def conv_b(b):
        return b.reshape(-1, 1).astype(jnp.float32)               # (OC, 1)

    f = params["wl1"].shape[1]
    f_pad = ((f + 127) // 128) * 128                              # 128-align fc1 K
    wl1 = params["wl1"].T.astype(jnp.bfloat16)                    # (F, 512)
    if f_pad > f:
        wl1 = jnp.pad(wl1, ((0, f_pad - f), (0, 0)))

    d = params["wl2"].shape[0]
    d_pad = ((d + 127) // 128) * 128                              # lane-dense fc2
    wl2 = params["wl2"].T.astype(jnp.bfloat16)                    # (512, D)
    bl2 = params["bl2"].reshape(1, -1).astype(jnp.float32)        # (1, D)
    if d_pad > d:
        wl2 = jnp.pad(wl2, ((0, 0), (0, d_pad - d)))
        bl2 = jnp.pad(bl2, ((0, 0), (0, d_pad - d)))

    return {
        "w1": conv_w(params["w1"]), "b1": conv_b(params["b1"]),
        "w2": conv_w(params["w2"]), "b2": conv_b(params["b2"]),
        "w3": conv_w(params["w3"]), "b3": conv_b(params["b3"]),
        "wl1": wl1,
        "bl1": params["bl1"].reshape(1, -1).astype(jnp.float32),
        "wl2": wl2,
        "bl2": bl2,
    }


def nature_cnn_forward(observations, cparams, *, output_dim):
    """observations: (B, C, H, W) float32 -> (B, output_dim) float32."""
    bsz = observations.shape[0]
    # Single layout change at the input: (B,C,H,W) -> (C,B,H,W), cast to bf16.
    x = jnp.transpose(observations, (1, 0, 2, 3)).astype(jnp.bfloat16)

    # Conv stack: channels-first GEMMs chain with no runtime transposes.
    # TODO(synk): fuse all three layers into one pallas_call tiled over batch
    # with VMEM-resident intermediates once im2col is built in-kernel.
    for wk, bk, ksz, stride in (("w1", "b1", 8, 4),
                                ("w2", "b2", 4, 2),
                                ("w3", "b3", 3, 1)):
        cols, oh, ow = _im2col_cfirst(x, ksz, ksz, stride)        # (K, M) bf16
        y = conv_gemm(cparams[wk], cols, cparams[bk], relu=True)  # (OC, M) bf16
        x = y.reshape(cparams[wk].shape[0], bsz, oh, ow)          # next (C,B,H,W)

    # Flatten in PyTorch (C, H, W) order, pad K to the 128-aligned wl1 rows.
    # TODO(synk): fold this transpose + pad into the kernel chain.
    oc, _, h3, w3 = x.shape
    xf = jnp.transpose(x, (1, 0, 2, 3)).reshape(bsz, oc * h3 * w3)
    f_pad = cparams["wl1"].shape[0]
    if f_pad > xf.shape[1]:
        xf = jnp.pad(xf, ((0, 0), (0, f_pad - xf.shape[1])))

    # Fused fc1 + ReLU + fc2 in a single pallas_call; slice off D padding.
    out = fc_fused(xf, cparams["wl1"], cparams["bl1"],
                   cparams["wl2"], cparams["bl2"])
    return out[:, :output_dim]


# -----------------------------------------------------------------------------
# Pure-JAX reference with matching bf16 numerics (f32 accumulation) for a
# tolerance-asserted correctness check of the Pallas path.
# -----------------------------------------------------------------------------
def nature_cnn_reference(observations, params):
    x = observations.astype(jnp.bfloat16)
    for wk, bk, stride in (("w1", "b1", 4), ("w2", "b2", 2), ("w3", "b3", 1)):
        y = jax.lax.conv_general_dilated(
            x, params[wk].astype(jnp.bfloat16),
            window_strides=(stride, stride), padding="VALID",
            dimension_numbers=("NCHW", "OIHW", "NCHW"),
            preferred_element_type=jnp.float32)
        y = jnp.maximum(y + params[bk].reshape(1, -1, 1, 1), 0.0)
        x = y.astype(jnp.bfloat16)
    xf = x.reshape(x.shape[0], -1)                                # (B, C*H*W)
    h = jnp.dot(xf, params["wl1"].T.astype(jnp.bfloat16),
                preferred_element_type=jnp.float32) + params["bl1"]
    h = jnp.maximum(h, 0.0).astype(jnp.bfloat16)
    out = jnp.dot(h, params["wl2"].T.astype(jnp.bfloat16),
                  preferred_element_type=jnp.float32) + params["bl2"]
    return out


if __name__ == "__main__":
    # Small shapes consistent with the module; B is a multiple of 8 so the FC
    # sublane dim is dense (review item).  H = W = 36 -> conv stack
    # 36 -> 8 -> 3 -> 1, n_flatten = 64.
    batch = 8
    input_shape = (4, 36, 36)   # (C, H, W)
    output_dim = 16

    key = jax.random.PRNGKey(0)
    pkey, xkey = jax.random.split(key)
    params, _ = init_nature_cnn_params(pkey, input_shape, output_dim)
    cparams = preprocess_params(params)    # one-time layout / bf16 cast / padding

    observations = jax.random.normal(
        xkey, (batch,) + input_shape, dtype=jnp.float32
    )

    fwd = jax.jit(functools.partial(nature_cnn_forward, output_dim=output_dim))
    out = jax.block_until_ready(fwd(observations, cparams))

    assert out.shape == (batch, output_dim), out.shape
    assert out.dtype == jnp.float32

    # Tolerance-asserted pure-JAX reference (same bf16 numerics) — review item.
    ref = jax.block_until_ready(nature_cnn_reference(observations, params))
    max_err = float(jnp.max(jnp.abs(out - ref)))
    assert jnp.allclose(out, ref, rtol=2e-2, atol=2e-2), max_err

    print("KERNEL_OK")
</pallas_src>

<mosaic_0001>
module attributes {stable_mosaic.version = 11 : i64} {
  func.func @_conv_gemm_kernel(%arg0: i32, %arg1: i32, %arg2: memref<32x256xbf16, #tpu.memory_space<vmem>>, %arg3: memref<256x512xbf16, #tpu.memory_space<vmem>>, %arg4: memref<32x1xf32, #tpu.memory_space<vmem>>, %arg5: memref<32x512xbf16, #tpu.memory_space<vmem>>, %arg6: memref<32x512xf32, #tpu.memory_space<vmem>>) attributes {dimension_semantics = [#tpu.dimension_semantics<parallel>, #tpu.dimension_semantics<arbitrary>], iteration_bounds = array<i64: 1, 1>, scalar_prefetch = 0 : i64, scratch_operands = 1 : i64, tpu.core_type = #tpu.core_type<tc>, window_params = [{transform_indices = @transform_0, window_bounds = array<i64: 32, 256>}, {transform_indices = @transform_1, window_bounds = array<i64: 256, 512>}, {pipeline_mode = #tpu.pipeline_mode<synchronous>, transform_indices = @transform_2, window_bounds = array<i64: 32, 1>}, {transform_indices = @transform_3, window_bounds = array<i64: 32, 512>}]} {
    %c0_i32 = arith.constant 0 : i32
    %0 = arith.cmpi eq, %arg1, %c0_i32 : i32
    %1 = arith.extui %0 : i1 to i32
    %c0_i32_0 = arith.constant 0 : i32
    %2 = arith.cmpi ne, %1, %c0_i32_0 : i32
    scf.if %2 {
      %cst_10 = arith.constant 0.000000e+00 : f32
      %12 = vector.broadcast %cst_10 : f32 to vector<32x512xf32>
      %c0_11 = arith.constant 0 : index
      %c0_12 = arith.constant 0 : index
      %13 = vector.load %arg6[%c0_11, %c0_12] : memref<32x512xf32, #tpu.memory_space<vmem>>, vector<32x512xf32>
      tpu.vector_store %arg6[%c0_11, %c0_12], %12 {strides = array<i32>} : memref<32x512xf32, #tpu.memory_space<vmem>>, vector<32x512xf32>,
    } else {
    }
    %c0 = arith.constant 0 : index
    %c0_1 = arith.constant 0 : index
    %3 = vector.load %arg6[%c0, %c0_1] : memref<32x512xf32, #tpu.memory_space<vmem>>, vector<32x512xf32>
    %c0_2 = arith.constant 0 : index
    %c0_3 = arith.constant 0 : index
    %4 = vector.load %arg2[%c0_2, %c0_3] : memref<32x256xbf16, #tpu.memory_space<vmem>>, vector<32x256xbf16>
    %c0_4 = arith.constant 0 : index
    %c0_5 = arith.constant 0 : index
    %5 = vector.load %arg3[%c0_4, %c0_5] : memref<256x512xbf16, #tpu.memory_space<vmem>>, vector<256x512xbf16>
    %cst = arith.constant dense<0.000000e+00> : vector<32x512xf32>
    %6 = tpu.matmul %4, %5, %cst {dimension_numbers = #tpu.dot_dimension_numbers<[1], [0], [0], [1], [0, 0, 1, 1], [], []>} : vector<32x256xbf16>, vector<256x512xbf16>, vector<32x512xf32> -> vector<32x512xf32>
    %7 = arith.addf %3, %6 : vector<32x512xf32>
    %c0_6 = arith.constant 0 : index
    %c0_7 = arith.constant 0 : index
    %8 = vector.load %arg6[%c0_6, %c0_7] : memref<32x512xf32, #tpu.memory_space<vmem>>, vector<32x512xf32>
    tpu.vector_store %arg6[%c0_6, %c0_7], %7 {strides = array<i32>} : memref<32x512xf32, #tpu.memory_space<vmem>>, vector<32x512xf32>,
    %c0_i32_8 = arith.constant 0 : i32
    %9 = arith.cmpi eq, %arg1, %c0_i32_8 : i32
    %10 = arith.extui %9 : i1 to i32
    %c0_i32_9 = arith.constant 0 : i32
    %11 = arith.cmpi ne, %10, %c0_i32_9 : i32
    scf.if %11 {
      %c0_10 = arith.constant 0 : index
      %c0_11 = arith.constant 0 : index
      %12 = vector.load %arg6[%c0_10, %c0_11] : memref<32x512xf32, #tpu.memory_space<vmem>>, vector<32x512xf32>
      %c0_12 = arith.constant 0 : index
      %c0_13 = arith.constant 0 : index
      %13 = vector.load %arg4[%c0_12, %c0_13] : memref<32x1xf32, #tpu.memory_space<vmem>>, vector<32x1xf32>
      %14 = vector.broadcast %13 : vector<32x1xf32> to vector<32x512xf32>
      %15 = arith.addf %12, %14 : vector<32x512xf32>
      %cst_14 = arith.constant 0.000000e+00 : f32
      %16 = vector.broadcast %cst_14 : f32 to vector<32x512xf32>
      %17 = arith.maximumf %15, %16 : vector<32x512xf32>
      %18 = arith.truncf %17 : vector<32x512xf32> to vector<32x512xbf16>
      %c0_15 = arith.constant 0 : index
      %c0_16 = arith.constant 0 : index
      %19 = vector.load %arg5[%c0_15, %c0_16] : memref<32x512xbf16, #tpu.memory_space<vmem>>, vector<32x512xbf16>
      tpu.vector_store %arg5[%c0_15, %c0_16], %18 {strides = array<i32>} : memref<32x512xbf16, #tpu.memory_space<vmem>>, vector<32x512xbf16>,
    } else {
    }
    return
  }
  func.func @transform_0(%arg0: i32, %arg1: i32) -> (i32, i32) {
    %c0_i32 = arith.constant 0 : i32
    %c0_i32_0 = arith.constant 0 : i32
    return %c0_i32, %arg1 : i32, i32
  }
  func.func @transform_1(%arg0: i32, %arg1: i32) -> (i32, i32) {
    %c0_i32 = arith.constant 0 : i32
    return %arg1, %arg0 : i32, i32
  }
  func.func @transform_2(%arg0: i32, %arg1: i32) -> (i32, i32) {
    %c0_i32 = arith.constant 0 : i32
    %c0_i32_0 = arith.constant 0 : i32
    %c0_i32_1 = arith.constant 0 : i32
    return %c0_i32, %c0_i32_0 : i32, i32
  }
  func.func @transform_3(%arg0: i32, %arg1: i32) -> (i32, i32) {
    %c0_i32 = arith.constant 0 : i32
    %c0_i32_0 = arith.constant 0 : i32
    return %c0_i32, %arg0 : i32, i32
  }
}

module attributes {stable_mosaic.version = 11 : i64} {
  func.func @_conv_gemm_kernel(%arg0: i32, %arg1: i32, %arg2: memref<64x512xbf16, #tpu.memory_space<vmem>>, %arg3: memref<512x72xbf16, #tpu.memory_space<vmem>>, %arg4: memref<64x1xf32, #tpu.memory_space<vmem>>, %arg5: memref<64x72xbf16, #tpu.memory_space<vmem>>, %arg6: memref<64x72xf32, #tpu.memory_space<vmem>>) attributes {dimension_semantics = [#tpu.dimension_semantics<parallel>, #tpu.dimension_semantics<arbitrary>], iteration_bounds = array<i64: 1, 1>, scalar_prefetch = 0 : i64, scratch_operands = 1 : i64, tpu.core_type = #tpu.core_type<tc>, window_params = [{transform_indices = @transform_0, window_bounds = array<i64: 64, 512>}, {transform_indices = @transform_1, window_bounds = array<i64: 512, 72>}, {pipeline_mode = #tpu.pipeline_mode<synchronous>, transform_indices = @transform_2, window_bounds = array<i64: 64, 1>}, {transform_indices = @transform_3, window_bounds = array<i64: 64, 72>}]} {
    %c0_i32 = arith.constant 0 : i32
    %0 = arith.cmpi eq, %arg1, %c0_i32 : i32
    %1 = arith.extui %0 : i1 to i32
    %c0_i32_0 = arith.constant 0 : i32
    %2 = arith.cmpi ne, %1, %c0_i32_0 : i32
    scf.if %2 {
      %cst_10 = arith.constant 0.000000e+00 : f32
      %12 = vector.broadcast %cst_10 : f32 to vector<64x72xf32>
      %c0_11 = arith.constant 0 : index
      %c0_12 = arith.constant 0 : index
      %13 = vector.load %arg6[%c0_11, %c0_12] : memref<64x72xf32, #tpu.memory_space<vmem>>, vector<64x72xf32>
      tpu.vector_store %arg6[%c0_11, %c0_12], %12 {strides = array<i32>} : memref<64x72xf32, #tpu.memory_space<vmem>>, vector<64x72xf32>,
    } else {
    }
    %c0 = arith.constant 0 : index
    %c0_1 = arith.constant 0 : index
    %3 = vector.load %arg6[%c0, %c0_1] : memref<64x72xf32, #tpu.memory_space<vmem>>, vector<64x72xf32>
    %c0_2 = arith.constant 0 : index
    %c0_3 = arith.constant 0 : index
    %4 = vector.load %arg2[%c0_2, %c0_3] : memref<64x512xbf16, #tpu.memory_space<vmem>>, vector<64x512xbf16>
    %c0_4 = arith.constant 0 : index
    %c0_5 = arith.constant 0 : index
    %5 = vector.load %arg3[%c0_4, %c0_5] : memref<512x72xbf16, #tpu.memory_space<vmem>>, vector<512x72xbf16>
    %cst = arith.constant dense<0.000000e+00> : vector<64x72xf32>
    %6 = tpu.matmul %4, %5, %cst {dimension_numbers = #tpu.dot_dimension_numbers<[1], [0], [0], [1], [0, 0, 1, 1], [], []>} : vector<64x512xbf16>, vector<512x72xbf16>, vector<64x72xf32> -> vector<64x72xf32>
    %7 = arith.addf %3, %6 : vector<64x72xf32>
    %c0_6 = arith.constant 0 : index
    %c0_7 = arith.constant 0 : index
    %8 = vector.load %arg6[%c0_6, %c0_7] : memref<64x72xf32, #tpu.memory_space<vmem>>, vector<64x72xf32>
    tpu.vector_store %arg6[%c0_6, %c0_7], %7 {strides = array<i32>} : memref<64x72xf32, #tpu.memory_space<vmem>>, vector<64x72xf32>,
    %c0_i32_8 = arith.constant 0 : i32
    %9 = arith.cmpi eq, %arg1, %c0_i32_8 : i32
    %10 = arith.extui %9 : i1 to i32
    %c0_i32_9 = arith.constant 0 : i32
    %11 = arith.cmpi ne, %10, %c0_i32_9 : i32
    scf.if %11 {
      %c0_10 = arith.constant 0 : index
      %c0_11 = arith.constant 0 : index
      %12 = vector.load %arg6[%c0_10, %c0_11] : memref<64x72xf32, #tpu.memory_space<vmem>>, vector<64x72xf32>
      %c0_12 = arith.constant 0 : index
      %c0_13 = arith.constant 0 : index
      %13 = vector.load %arg4[%c0_12, %c0_13] : memref<64x1xf32, #tpu.memory_space<vmem>>, vector<64x1xf32>
      %14 = vector.broadcast %13 : vector<64x1xf32> to vector<64x72xf32>
      %15 = arith.addf %12, %14 : vector<64x72xf32>
      %cst_14 = arith.constant 0.000000e+00 : f32
      %16 = vector.broadcast %cst_14 : f32 to vector<64x72xf32>
      %17 = arith.maximumf %15, %16 : vector<64x72xf32>
      %18 = arith.truncf %17 : vector<64x72xf32> to vector<64x72xbf16>
      %c0_15 = arith.constant 0 : index
      %c0_16 = arith.constant 0 : index
      %19 = vector.load %arg5[%c0_15, %c0_16] : memref<64x72xbf16, #tpu.memory_space<vmem>>, vector<64x72xbf16>
      tpu.vector_store %arg5[%c0_15, %c0_16], %18 {strides = array<i32>} : memref<64x72xbf16, #tpu.memory_space<vmem>>, vector<64x72xbf16>,
    } else {
    }
    return
  }
  func.func @transform_0(%arg0: i32, %arg1: i32) -> (i32, i32) {
    %c0_i32 = arith.constant 0 : i32
    %c0_i32_0 = arith.constant 0 : i32
    return %c0_i32, %arg1 : i32, i32
  }
  func.func @transform_1(%arg0: i32, %arg1: i32) -> (i32, i32) {
    %c0_i32 = arith.constant 0 : i32
    return %arg1, %arg0 : i32, i32
  }
  func.func @transform_2(%arg0: i32, %arg1: i32) -> (i32, i32) {
    %c0_i32 = arith.constant 0 : i32
    %c0_i32_0 = arith.constant 0 : i32
    %c0_i32_1 = arith.constant 0 : i32
    return %c0_i32, %c0_i32_0 : i32, i32
  }
  func.func @transform_3(%arg0: i32, %arg1: i32) -> (i32, i32) {
    %c0_i32 = arith.constant 0 : i32
    %c0_i32_0 = arith.constant 0 : i32
    return %c0_i32, %arg0 : i32, i32
  }
}

module attributes {stable_mosaic.version = 11 : i64} {
  func.func @_conv_gemm_kernel(%arg0: i32, %arg1: i32, %arg2: memref<64x576xbf16, #tpu.memory_space<vmem>>, %arg3: memref<576x8xbf16, #tpu.memory_space<vmem>>, %arg4: memref<64x1xf32, #tpu.memory_space<vmem>>, %arg5: memref<64x8xbf16, #tpu.memory_space<vmem>>, %arg6: memref<64x8xf32, #tpu.memory_space<vmem>>) attributes {dimension_semantics = [#tpu.dimension_semantics<parallel>, #tpu.dimension_semantics<arbitrary>], iteration_bounds = array<i64: 1, 1>, scalar_prefetch = 0 : i64, scratch_operands = 1 : i64, tpu.core_type = #tpu.core_type<tc>, window_params = [{transform_indices = @transform_0, window_bounds = array<i64: 64, 576>}, {transform_indices = @transform_1, window_bounds = array<i64: 576, 8>}, {pipeline_mode = #tpu.pipeline_mode<synchronous>, transform_indices = @transform_2, window_bounds = array<i64: 64, 1>}, {transform_indices = @transform_3, window_bounds = array<i64: 64, 8>}]} {
    %c0_i32 = arith.constant 0 : i32
    %0 = arith.cmpi eq, %arg1, %c0_i32 : i32
    %1 = arith.extui %0 : i1 to i32
    %c0_i32_0 = arith.constant 0 : i32
    %2 = arith.cmpi ne, %1, %c0_i32_0 : i32
    scf.if %2 {
      %cst_10 = arith.constant 0.000000e+00 : f32
      %12 = vector.broadcast %cst_10 : f32 to vector<64x8xf32>
      %c0_11 = arith.constant 0 : index
      %c0_12 = arith.constant 0 : index
      %13 = vector.load %arg6[%c0_11, %c0_12] : memref<64x8xf32, #tpu.memory_space<vmem>>, vector<64x8xf32>
      tpu.vector_store %arg6[%c0_11, %c0_12], %12 {strides = array<i32>} : memref<64x8xf32, #tpu.memory_space<vmem>>, vector<64x8xf32>,
    } else {
    }
    %c0 = arith.constant 0 : index
    %c0_1 = arith.constant 0 : index
    %3 = vector.load %arg6[%c0, %c0_1] : memref<64x8xf32, #tpu.memory_space<vmem>>, vector<64x8xf32>
    %c0_2 = arith.constant 0 : index
    %c0_3 = arith.constant 0 : index
    %4 = vector.load %arg2[%c0_2, %c0_3] : memref<64x576xbf16, #tpu.memory_space<vmem>>, vector<64x576xbf16>
    %c0_4 = arith.constant 0 : index
    %c0_5 = arith.constant 0 : index
    %5 = vector.load %arg3[%c0_4, %c0_5] : memref<576x8xbf16, #tpu.memory_space<vmem>>, vector<576x8xbf16>
    %cst = arith.constant dense<0.000000e+00> : vector<64x8xf32>
    %6 = tpu.matmul %4, %5, %cst {dimension_numbers = #tpu.dot_dimension_numbers<[1], [0], [0], [1], [0, 0, 1, 1], [], []>} : vector<64x576xbf16>, vector<576x8xbf16>, vector<64x8xf32> -> vector<64x8xf32>
    %7 = arith.addf %3, %6 : vector<64x8xf32>
    %c0_6 = arith.constant 0 : index
    %c0_7 = arith.constant 0 : index
    %8 = vector.load %arg6[%c0_6, %c0_7] : memref<64x8xf32, #tpu.memory_space<vmem>>, vector<64x8xf32>
    tpu.vector_store %arg6[%c0_6, %c0_7], %7 {strides = array<i32>} : memref<64x8xf32, #tpu.memory_space<vmem>>, vector<64x8xf32>,
    %c0_i32_8 = arith.constant 0 : i32
    %9 = arith.cmpi eq, %arg1, %c0_i32_8 : i32
    %10 = arith.extui %9 : i1 to i32
    %c0_i32_9 = arith.constant 0 : i32
    %11 = arith.cmpi ne, %10, %c0_i32_9 : i32
    scf.if %11 {
      %c0_10 = arith.constant 0 : index
      %c0_11 = arith.constant 0 : index
      %12 = vector.load %arg6[%c0_10, %c0_11] : memref<64x8xf32, #tpu.memory_space<vmem>>, vector<64x8xf32>
      %c0_12 = arith.constant 0 : index
      %c0_13 = arith.constant 0 : index
      %13 = vector.load %arg4[%c0_12, %c0_13] : memref<64x1xf32, #tpu.memory_space<vmem>>, vector<64x1xf32>
      %14 = vector.broadcast %13 : vector<64x1xf32> to vector<64x8xf32>
      %15 = arith.addf %12, %14 : vector<64x8xf32>
      %cst_14 = arith.constant 0.000000e+00 : f32
      %16 = vector.broadcast %cst_14 : f32 to vector<64x8xf32>
      %17 = arith.maximumf %15, %16 : vector<64x8xf32>
      %18 = arith.truncf %17 : vector<64x8xf32> to vector<64x8xbf16>
      %c0_15 = arith.constant 0 : index
      %c0_16 = arith.constant 0 : index
      %19 = vector.load %arg5[%c0_15, %c0_16] : memref<64x8xbf16, #tpu.memory_space<vmem>>, vector<64x8xbf16>
      tpu.vector_store %arg5[%c0_15, %c0_16], %18 {strides = array<i32>} : memref<64x8xbf16, #tpu.memory_space<vmem>>, vector<64x8xbf16>,
    } else {
    }
    return
  }
  func.func @transform_0(%arg0: i32, %arg1: i32) -> (i32, i32) {
    %c0_i32 = arith.constant 0 : i32
    %c0_i32_0 = arith.constant 0 : i32
    return %c0_i32, %arg1 : i32, i32
  }
  func.func @transform_1(%arg0: i32, %arg1: i32) -> (i32, i32) {
    %c0_i32 = arith.constant 0 : i32
    return %arg1, %arg0 : i32, i32
  }
  func.func @transform_2(%arg0: i32, %arg1: i32) -> (i32, i32) {
    %c0_i32 = arith.constant 0 : i32
    %c0_i32_0 = arith.constant 0 : i32
    %c0_i32_1 = arith.constant 0 : i32
    return %c0_i32, %c0_i32_0 : i32, i32
  }
  func.func @transform_3(%arg0: i32, %arg1: i32) -> (i32, i32) {
    %c0_i32 = arith.constant 0 : i32
    %c0_i32_0 = arith.constant 0 : i32
    return %c0_i32, %arg0 : i32, i32
  }
}

module attributes {stable_mosaic.version = 11 : i64} {
  func.func @_fc_fused_kernel(%arg0: i32, %arg1: i32, %arg2: memref<8x128xbf16, #tpu.memory_space<vmem>>, %arg3: memref<128x512xbf16, #tpu.memory_space<vmem>>, %arg4: memref<1x512xf32, #tpu.memory_space<vmem>>, %arg5: memref<512x128xbf16, #tpu.memory_space<vmem>>, %arg6: memref<1x128xf32, #tpu.memory_space<vmem>>, %arg7: memref<8x128xf32, #tpu.memory_space<vmem>>, %arg8: memref<8x512xf32, #tpu.memory_space<vmem>>) attributes {dimension_semantics = [#tpu.dimension_semantics<parallel>, #tpu.dimension_semantics<arbitrary>], iteration_bounds = array<i64: 1, 1>, scalar_prefetch = 0 : i64, scratch_operands = 1 : i64, tpu.core_type = #tpu.core_type<tc>, window_params = [{transform_indices = @transform_0, window_bounds = array<i64: 8, 128>}, {transform_indices = @transform_1, window_bounds = array<i64: 128, 512>}, {pipeline_mode = #tpu.pipeline_mode<synchronous>, transform_indices = @transform_2, window_bounds = array<i64: 1, 512>}, {pipeline_mode = #tpu.pipeline_mode<synchronous>, transform_indices = @transform_3, window_bounds = array<i64: 512, 128>}, {pipeline_mode = #tpu.pipeline_mode<synchronous>, transform_indices = @transform_4, window_bounds = array<i64: 1, 128>}, {transform_indices = @transform_5, window_bounds = array<i64: 8, 128>}]} {
    %c0_i32 = arith.constant 0 : i32
    %0 = arith.cmpi eq, %arg1, %c0_i32 : i32
    %1 = arith.extui %0 : i1 to i32
    %c0_i32_0 = arith.constant 0 : i32
    %2 = arith.cmpi ne, %1, %c0_i32_0 : i32
    scf.if %2 {
      %cst_10 = arith.constant 0.000000e+00 : f32
      %12 = vector.broadcast %cst_10 : f32 to vector<8x512xf32>
      %c0_11 = arith.constant 0 : index
      %c0_12 = arith.constant 0 : index
      %13 = vector.load %arg8[%c0_11, %c0_12] : memref<8x512xf32, #tpu.memory_space<vmem>>, vector<8x512xf32>
      tpu.vector_store %arg8[%c0_11, %c0_12], %12 {strides = array<i32>} : memref<8x512xf32, #tpu.memory_space<vmem>>, vector<8x512xf32>,
    } else {
    }
    %c0 = arith.constant 0 : index
    %c0_1 = arith.constant 0 : index
    %3 = vector.load %arg8[%c0, %c0_1] : memref<8x512xf32, #tpu.memory_space<vmem>>, vector<8x512xf32>
    %c0_2 = arith.constant 0 : index
    %c0_3 = arith.constant 0 : index
    %4 = vector.load %arg2[%c0_2, %c0_3] : memref<8x128xbf16, #tpu.memory_space<vmem>>, vector<8x128xbf16>
    %c0_4 = arith.constant 0 : index
    %c0_5 = arith.constant 0 : index
    %5 = vector.load %arg3[%c0_4, %c0_5] : memref<128x512xbf16, #tpu.memory_space<vmem>>, vector<128x512xbf16>
    %cst = arith.constant dense<0.000000e+00> : vector<8x512xf32>
    %6 = tpu.matmul %4, %5, %cst {dimension_numbers = #tpu.dot_dimension_numbers<[1], [0], [0], [1], [0, 0, 1, 1], [], []>} : vector<8x128xbf16>, vector<128x512xbf16>, vector<8x512xf32> -> vector<8x512xf32>
    %7 = arith.addf %3, %6 : vector<8x512xf32>
    %c0_6 = arith.constant 0 : index
    %c0_7 = arith.constant 0 : index
    %8 = vector.load %arg8[%c0_6, %c0_7] : memref<8x512xf32, #tpu.memory_space<vmem>>, vector<8x512xf32>
    tpu.vector_store %arg8[%c0_6, %c0_7], %7 {strides = array<i32>} : memref<8x512xf32, #tpu.memory_space<vmem>>, vector<8x512xf32>,
    %c0_i32_8 = arith.constant 0 : i32
    %9 = arith.cmpi eq, %arg1, %c0_i32_8 : i32
    %10 = arith.extui %9 : i1 to i32
    %c0_i32_9 = arith.constant 0 : i32
    %11 = arith.cmpi ne, %10, %c0_i32_9 : i32
    scf.if %11 {
      %c0_10 = arith.constant 0 : index
      %c0_11 = arith.constant 0 : index
      %12 = vector.load %arg8[%c0_10, %c0_11] : memref<8x512xf32, #tpu.memory_space<vmem>>, vector<8x512xf32>
      %c0_12 = arith.constant 0 : index
      %c0_13 = arith.constant 0 : index
      %13 = vector.load %arg4[%c0_12, %c0_13] : memref<1x512xf32, #tpu.memory_space<vmem>>, vector<1x512xf32>
      %14 = vector.broadcast %13 : vector<1x512xf32> to vector<8x512xf32>
      %15 = arith.addf %12, %14 : vector<8x512xf32>
      %cst_14 = arith.constant 0.000000e+00 : f32
      %16 = vector.broadcast %cst_14 : f32 to vector<8x512xf32>
      %17 = arith.maximumf %15, %16 : vector<8x512xf32>
      %18 = arith.truncf %17 : vector<8x512xf32> to vector<8x512xbf16>
      %c0_15 = arith.constant 0 : index
      %c0_16 = arith.constant 0 : index
      %19 = vector.load %arg5[%c0_15, %c0_16] : memref<512x128xbf16, #tpu.memory_space<vmem>>, vector<512x128xbf16>
      %cst_17 = arith.constant dense<0.000000e+00> : vector<8x128xf32>
      %20 = tpu.matmul %18, %19, %cst_17 {dimension_numbers = #tpu.dot_dimension_numbers<[1], [0], [0], [1], [0, 0, 1, 1], [], []>} : vector<8x512xbf16>, vector<512x128xbf16>, vector<8x128xf32> -> vector<8x128xf32>
      %c0_18 = arith.constant 0 : index
      %c0_19 = arith.constant 0 : index
      %21 = vector.load %arg6[%c0_18, %c0_19] : memref<1x128xf32, #tpu.memory_space<vmem>>, vector<1x128xf32>
      %22 = vector.broadcast %21 : vector<1x128xf32> to vector<8x128xf32>
      %23 = arith.addf %20, %22 : vector<8x128xf32>
      %c0_20 = arith.constant 0 : index
      %c0_21 = arith.constant 0 : index
      %24 = vector.load %arg7[%c0_20, %c0_21] : memref<8x128xf32, #tpu.memory_space<vmem>>, vector<8x128xf32>
      tpu.vector_store %arg7[%c0_20, %c0_21], %23 {strides = array<i32>} : memref<8x128xf32, #tpu.memory_space<vmem>>, vector<8x128xf32>,
    } else {
    }
    return
  }
  func.func @transform_0(%arg0: i32, %arg1: i32) -> (i32, i32) {
    %c0_i32 = arith.constant 0 : i32
    return %arg0, %arg1 : i32, i32
  }
  func.func @transform_1(%arg0: i32, %arg1: i32) -> (i32, i32) {
    %c0_i32 = arith.constant 0 : i32
    %c0_i32_0 = arith.constant 0 : i32
    return %arg1, %c0_i32 : i32, i32
  }
  func.func @transform_2(%arg0: i32, %arg1: i32) -> (i32, i32) {
    %c0_i32 = arith.constant 0 : i32
    %c0_i32_0 = arith.constant 0 : i32
    %c0_i32_1 = arith.constant 0 : i32
    return %c0_i32, %c0_i32_0 : i32, i32
  }
  func.func @transform_3(%arg0: i32, %arg1: i32) -> (i32, i32) {
    %c0_i32 = arith.constant 0 : i32
    %c0_i32_0 = arith.constant 0 : i32
    %c0_i32_1 = arith.constant 0 : i32
    return %c0_i32, %c0_i32_0 : i32, i32
  }
  func.func @transform_4(%arg0: i32, %arg1: i32) -> (i32, i32) {
    %c0_i32 = arith.constant 0 : i32
    %c0_i32_0 = arith.constant 0 : i32
    %c0_i32_1 = arith.constant 0 : i32
    return %c0_i32, %c0_i32_0 : i32, i32
  }
  func.func @transform_5(%arg0: i32, %arg1: i32) -> (i32, i32) {
    %c0_i32 = arith.constant 0 : i32
    %c0_i32_0 = arith.constant 0 : i32
    return %arg0, %c0_i32 : i32, i32
  }
}

</mosaic_0001>

<llo_original>
// kernel: nature_cnn_forward.4
$region0: #{nature_cnn_forward.4}
  #allocation0 [shape = 'u32[]', space=smem, size = 0x4, offset = 0x4, fixed_abs, tag = 'smem constant byte address 0x4 - core index']
  #allocation1 [shape = 'u32[72,128]{1,0:T(1,128)}', space=vmem, size = 0x9000, scoped, tag = 'internal scratch']
  #allocation2 [shape = 'f32[32,512]{1,0:T(8,128)}', space=vmem, size = 0x10000, scoped, tag = 'scratch operand']
  %s0 = inlined_call_operand.vmem [shape: bf16[32,256], index: 0, kind: input, shape index: {}]
  %s1 = inlined_call_operand.vmem [shape: bf16[256,512], index: 1, kind: input, shape index: {}]
  %s2 = inlined_call_operand.vmem [shape: f32[32,1], index: 2, kind: input, shape index: {}]
  %s3 = inlined_call_operand.vmem [shape: bf16[32,512], index: 3, kind: output, shape index: {}]
  %s4 = sld [smem:[#allocation0]]
  $region30: #{nature_cnn_forward.4} parent=0
    _
  %s6 = ssub.s32 1, %s4
  %s7 = scalar_select 0, %s6, %s4
  // Predicated region
  $region2: #{nature_cnn_forward.4} parent=0 // pred_check
    _
  $region3: #{nature_cnn_forward.4} parent=0 // pred_check_branch
    %9 = sbr.rel (0) target = $region5
  $region4: #{nature_cnn_forward.4} parent=0 // pred_region
    _
  $region5: #{nature_cnn_forward.4} parent=0 // pred_fallthru
    _
  // Predicated region
  $region6: #{nature_cnn_forward.4} parent=0 // pred_check
    _
  $region7: #{nature_cnn_forward.4} parent=0 // pred_check_branch
    %11 = sbr.rel (0) target = $region9
  $region8: #{nature_cnn_forward.4} parent=0 // pred_region
    _
  $region9: #{nature_cnn_forward.4} parent=0 // pred_fallthru
    _
  // Predicated region
  $region10: #{nature_cnn_forward.4} parent=0 // pred_check
    _
  $region11: #{nature_cnn_forward.4} parent=0 // pred_check_branch
    %13 = sbr.rel (0) target = $region13
  $region12: #{nature_cnn_forward.4} parent=0 // pred_region
    _
  $region13: #{nature_cnn_forward.4} parent=0 // pred_fallthru
    _
  %p14 = scmp.eq.s32.totalorder 0, 0
  // Predicated region
  $region14: #{nature_cnn_forward.4} parent=0 // pred_check
    %p15 = pneg %p14
  $region15: #{nature_cnn_forward.4} parent=0 // pred_check_branch
    %17 = sbr.rel (%p15) target = $region17
  $region16: #{nature_cnn_forward.4} parent=0 // pred_region
    %18 = vst [vmem:[#allocation2] sm:$0xff] 0.0
    %19 = vst [vmem:[#allocation2 + $0x8] sm:$0xff] 0.0
    %20 = vst [vmem:[#allocation2 + $0x10] sm:$0xff] 0.0
    %21 = vst [vmem:[#allocation2 + $0x18] sm:$0xff] 0.0
    %22 = vst [vmem:[#allocation2 + $0x20] sm:$0xff] 0.0
    %23 = vst [vmem:[#allocation2 + $0x28] sm:$0xff] 0.0
    %24 = vst [vmem:[#allocation2 + $0x30] sm:$0xff] 0.0
    %25 = vst [vmem:[#allocation2 + $0x38] sm:$0xff] 0.0
    %26 = vst [vmem:[#allocation2 + $0x40] sm:$0xff] 0.0
    %27 = vst [vmem:[#allocation2 + $0x48] sm:$0xff] 0.0
    %28 = vst [vmem:[#allocation2 + $0x50] sm:$0xff] 0.0
    %29 = vst [vmem:[#allocation2 + $0x58] sm:$0xff] 0.0
    %30 = vst [vmem:[#allocation2 + $0x60] sm:$0xff] 0.0
    %31 = vst [vmem:[#allocation2 + $0x68] sm:$0xff] 0.0
    %32 = vst [vmem:[#allocation2 + $0x70] sm:$0xff] 0.0
    %33 = vst [vmem:[#allocation2 + $0x78] sm:$0xff] 0.0
  $region17: #{nature_cnn_forward.4} parent=0 // pred_fallthru
    _
  %v34 = vld [vmem:[#allocation2] sm:$0xff]
  %v35 = vld [vmem:[#allocation2 + $0x8] sm:$0xff]
  %v36 = vld [vmem:[#allocation2 + $0x10] sm:$0xff]
  %v37 = vld [vmem:[#allocation2 + $0x18] sm:$0xff]
  %v38 = vld [vmem:[#allocation2 + $0x20] sm:$0xff]
  %v39 = vld [vmem:[#allocation2 + $0x28] sm:$0xff]
  %v40 = vld [vmem:[#allocation2 + $0x30] sm:$0xff]
  %v41 = vld [vmem:[#allocation2 + $0x38] sm:$0xff]
  %v42 = vld [vmem:[#allocation2 + $0x40] sm:$0xff]
  %v43 = vld [vmem:[#allocation2 + $0x48] sm:$0xff]
  %v44 = vld [vmem:[#allocation2 + $0x50] sm:$0xff]
  %v45 = vld [vmem:[#allocation2 + $0x58] sm:$0xff]
  %v46 = vld [vmem:[#allocation2 + $0x60] sm:$0xff]
  %v47 = vld [vmem:[#allocation2 + $0x68] sm:$0xff]
  %v48 = vld [vmem:[#allocation2 + $0x70] sm:$0xff]
  %v49 = vld [vmem:[#allocation2 + $0x78] sm:$0xff]
  %v50 = vld [vmem:[%s0] sm:$0xff]
  %v51 = vld [vmem:[%s0 + $0x8] sm:$0xff]
  %v52 = vld [vmem:[%s0 + $0x10] sm:$0xff]
  %v53 = vld [vmem:[%s0 + $0x18] sm:$0xff]
  %v54 = vld [vmem:[%s1] sm:$0xff]
  %v55 = vld [vmem:[%s1 + $0x8] sm:$0xff]
  %v56 = vld [vmem:[%s1 + $0x10] sm:$0xff]
  %v57 = vld [vmem:[%s1 + $0x18] sm:$0xff]
  %v58 = vld [vmem:[%s1 + $0x20] sm:$0xff]
  %v59 = vld [vmem:[%s1 + $0x28] sm:$0xff]
  %v60 = vld [vmem:[%s1 + $0x30] sm:$0xff]
  %v61 = vld [vmem:[%s1 + $0x38] sm:$0xff]
  %v62 = vld [vmem:[%s1 + $0x40] sm:$0xff]
  %v63 = vld [vmem:[%s1 + $0x48] sm:$0xff]
  %v64 = vld [vmem:[%s1 + $0x50] sm:$0xff]
  %v65 = vld [vmem:[%s1 + $0x58] sm:$0xff]
  %v66 = vld [vmem:[%s1 + $0x60] sm:$0xff]
  %v67 = vld [vmem:[%s1 + $0x68] sm:$0xff]
  %v68 = vld [vmem:[%s1 + $0x70] sm:$0xff]
  %v69 = vld [vmem:[%s1 + $0x78] sm:$0xff]
  %v70 = vld [vmem:[%s1 + $0x80] sm:$0xff]
  %v71 = vld [vmem:[%s1 + $0x88] sm:$0xff]
  %v72 = vld [vmem:[%s1 + $0x90] sm:$0xff]
  %v73 = vld [vmem:[%s1 + $0x98] sm:$0xff]
  %v74 = vld [vmem:[%s1 + $0xa0] sm:$0xff]
  %v75 = vld [vmem:[%s1 + $0xa8] sm:$0xff]
  %v76 = vld [vmem:[%s1 + $0xb0] sm:$0xff]
  %v77 = vld [vmem:[%s1 + $0xb8] sm:$0xff]
  %v78 = vld [vmem:[%s1 + $0xc0] sm:$0xff]
  %v79 = vld [vmem:[%s1 + $0xc8] sm:$0xff]
  %v80 = vld [vmem:[%s1 + $0xd0] sm:$0xff]
  %v81 = vld [vmem:[%s1 + $0xd8] sm:$0xff]
  %v82 = vld [vmem:[%s1 + $0xe0] sm:$0xff]
  %v83 = vld [vmem:[%s1 + $0xe8] sm:$0xff]
  %v84 = vld [vmem:[%s1 + $0xf0] sm:$0xff]
  %v85 = vld [vmem:[%s1 + $0xf8] sm:$0xff]
  %v86 = vld [vmem:[%s1 + $0x100] sm:$0xff]
  %v87 = vld [vmem:[%s1 + $0x108] sm:$0xff]
  %v88 = vld [vmem:[%s1 + $0x110] sm:$0xff]
  %v89 = vld [vmem:[%s1 + $0x118] sm:$0xff]
  %v90 = vld [vmem:[%s1 + $0x120] sm:$0xff]
  %v91 = vld [vmem:[%s1 + $0x128] sm:$0xff]
  %v92 = vld [vmem:[%s1 + $0x130] sm:$0xff]
  %v93 = vld [vmem:[%s1 + $0x138] sm:$0xff]
  %v94 = vld [vmem:[%s1 + $0x140] sm:$0xff]
  %v95 = vld [vmem:[%s1 + $0x148] sm:$0xff]
  %v96 = vld [vmem:[%s1 + $0x150] sm:$0xff]
  %v97 = vld [vmem:[%s1 + $0x158] sm:$0xff]
  %v98 = vld [vmem:[%s1 + $0x160] sm:$0xff]
  %v99 = vld [vmem:[%s1 + $0x168] sm:$0xff]
  %v100 = vld [vmem:[%s1 + $0x170] sm:$0xff]
  %v101 = vld [vmem:[%s1 + $0x178] sm:$0xff]
  %v102 = vld [vmem:[%s1 + $0x180] sm:$0xff]
  %v103 = vld [vmem:[%s1 + $0x188] sm:$0xff]
  %v104 = vld [vmem:[%s1 + $0x190] sm:$0xff]
  %v105 = vld [vmem:[%s1 + $0x198] sm:$0xff]
  %v106 = vld [vmem:[%s1 + $0x1a0] sm:$0xff]
  %v107 = vld [vmem:[%s1 + $0x1a8] sm:$0xff]
  %v108 = vld [vmem:[%s1 + $0x1b0] sm:$0xff]
  %v109 = vld [vmem:[%s1 + $0x1b8] sm:$0xff]
  %v110 = vld [vmem:[%s1 + $0x1c0] sm:$0xff]
  %v111 = vld [vmem:[%s1 + $0x1c8] sm:$0xff]
  %v112 = vld [vmem:[%s1 + $0x1d0] sm:$0xff]
  %v113 = vld [vmem:[%s1 + $0x1d8] sm:$0xff]
  %v114 = vld [vmem:[%s1 + $0x1e0] sm:$0xff]
  %v115 = vld [vmem:[%s1 + $0x1e8] sm:$0xff]
  %v116 = vld [vmem:[%s1 + $0x1f0] sm:$0xff]
  %v117 = vld [vmem:[%s1 + $0x1f8] sm:$0xff]
  %v122 = vunpack.c.l.b16 %v50
  %v123 = vunpack.c.h.b16 %v50
  %v124 = vunpack.c.l.b16 %v51
  %v125 = vunpack.c.h.b16 %v51
  %v126 = vunpack.c.l.b16 %v52
  %v127 = vunpack.c.h.b16 %v52
  %v128 = vunpack.c.l.b16 %v53
  %v129 = vunpack.c.h.b16 %v53
  %v130 = vpack.c.b16 %v124, %v122
  %v131 = vpack.c.b16 %v125, %v123
  %v132 = vpack.c.b16 %v128, %v126
  %v133 = vpack.c.b16 %v129, %v127
  %v202 = vunpack.c.l.b16 %v54
  %v203 = vunpack.c.h.b16 %v54
  %v204 = vunpack.c.l.b16 %v55
  %v205 = vunpack.c.h.b16 %v55
  %v206 = vunpack.c.l.b16 %v56
  %v207 = vunpack.c.h.b16 %v56
  %v208 = vunpack.c.l.b16 %v57
  %v209 = vunpack.c.h.b16 %v57
  %v210 = vunpack.c.l.b16 %v58
  %v211 = vunpack.c.h.b16 %v58
  %v212 = vunpack.c.l.b16 %v59
  %v213 = vunpack.c.h.b16 %v59
  %v214 = vunpack.c.l.b16 %v60
  %v215 = vunpack.c.h.b16 %v60
  %v216 = vunpack.c.l.b16 %v61
  %v217 = vunpack.c.h.b16 %v61
  %v218 = vunpack.c.l.b16 %v62
  %v219 = vunpack.c.h.b16 %v62
  %v220 = vunpack.c.l.b16 %v63
  %v221 = vunpack.c.h.b16 %v63
  %v222 = vunpack.c.l.b16 %v64
  %v223 = vunpack.c.h.b16 %v64
  %v224 = vunpack.c.l.b16 %v65
  %v225 = vunpack.c.h.b16 %v65
  %v226 = vunpack.c.l.b16 %v66
  %v227 = vunpack.c.h.b16 %v66
  %v228 = vunpack.c.l.b16 %v67
  %v229 = vunpack.c.h.b16 %v67
  %v230 = vunpack.c.l.b16 %v68
  %v231 = vunpack.c.h.b16 %v68
  %v232 = vunpack.c.l.b16 %v69
  %v233 = vunpack.c.h.b16 %v69
  %v234 = vunpack.c.l.b16 %v70
  %v235 = vunpack.c.h.b16 %v70
  %v236 = vunpack.c.l.b16 %v71
  %v237 = vunpack.c.h.b16 %v71
  %v238 = vunpack.c.l.b16 %v72
  %v239 = vunpack.c.h.b16 %v72
  %v240 = vunpack.c.l.b16 %v73
  %v241 = vunpack.c.h.b16 %v73
  %v242 = vunpack.c.l.b16 %v74
  %v243 = vunpack.c.h.b16 %v74
  %v244 = vunpack.c.l.b16 %v75
  %v245 = vunpack.c.h.b16 %v75
  %v246 = vunpack.c.l.b16 %v76
  %v247 = vunpack.c.h.b16 %v76
  %v248 = vunpack.c.l.b16 %v77
  %v249 = vunpack.c.h.b16 %v77
  %v250 = vunpack.c.l.b16 %v78
  %v251 = vunpack.c.h.b16 %v78
  %v252 = vunpack.c.l.b16 %v79
  %v253 = vunpack.c.h.b16 %v79
  %v254 = vunpack.c.l.b16 %v80
  %v255 = vunpack.c.h.b16 %v80
  %v256 = vunpack.c.l.b16 %v81
  %v257 = vunpack.c.h.b16 %v81
  %v258 = vunpack.c.l.b16 %v82
  %v259 = vunpack.c.h.b16 %v82
  %v260 = vunpack.c.l.b16 %v83
  %v261 = vunpack.c.h.b16 %v83
  %v262 = vunpack.c.l.b16 %v84
  %v263 = vunpack.c.h.b16 %v84
  %v264 = vunpack.c.l.b16 %v85
  %v265 = vunpack.c.h.b16 %v85
  %v266 = vunpack.c.l.b16 %v86
  %v267 = vunpack.c.h.b16 %v86
  %v268 = vunpack.c.l.b16 %v87
  %v269 = vunpack.c.h.b16 %v87
  %v270 = vunpack.c.l.b16 %v88
  %v271 = vunpack.c.h.b16 %v88
  %v272 = vunpack.c.l.b16 %v89
  %v273 = vunpack.c.h.b16 %v89
  %v274 = vunpack.c.l.b16 %v90
  %v275 = vunpack.c.h.b16 %v90
  %v276 = vunpack.c.l.b16 %v91
  %v277 = vunpack.c.h.b16 %v91
  %v278 = vunpack.c.l.b16 %v92
  %v279 = vunpack.c.h.b16 %v92
  %v280 = vunpack.c.l.b16 %v93
  %v281 = vunpack.c.h.b16 %v93
  %v282 = vunpack.c.l.b16 %v94
  %v283 = vunpack.c.h.b16 %v94
  %v284 = vunpack.c.l.b16 %v95
  %v285 = vunpack.c.h.b16 %v95
  %v286 = vunpack.c.l.b16 %v96
  %v287 = vunpack.c.h.b16 %v96
  %v288 = vunpack.c.l.b16 %v97
  %v289 = vunpack.c.h.b16 %v97
  %v290 = vunpack.c.l.b16 %v98
  %v291 = vunpack.c.h.b16 %v98
  %v292 = vunpack.c.l.b16 %v99
  %v293 = vunpack.c.h.b16 %v99
  %v294 = vunpack.c.l.b16 %v100
  %v295 = vunpack.c.h.b16 %v100
  %v296 = vunpack.c.l.b16 %v101
  %v297 = vunpack.c.h.b16 %v101
  %v298 = vunpack.c.l.b16 %v102
  %v299 = vunpack.c.h.b16 %v102
  %v300 = vunpack.c.l.b16 %v103
  %v301 = vunpack.c.h.b16 %v103
  %v302 = vunpack.c.l.b16 %v104
  %v303 = vunpack.c.h.b16 %v104
  %v304 = vunpack.c.l.b16 %v105
  %v305 = vunpack.c.h.b16 %v105
  %v306 = vunpack.c.l.b16 %v106
  %v307 = vunpack.c.h.b16 %v106
  %v308 = vunpack.c.l.b16 %v107
  %v309 = vunpack.c.h.b16 %v107
  %v310 = vunpack.c.l.b16 %v108
  %v311 = vunpack.c.h.b16 %v108
  %v312 = vunpack.c.l.b16 %v109
  %v313 = vunpack.c.h.b16 %v109
  %v314 = vunpack.c.l.b16 %v110
  %v315 = vunpack.c.h.b16 %v110
  %v316 = vunpack.c.l.b16 %v111
  %v317 = vunpack.c.h.b16 %v111
  %v318 = vunpack.c.l.b16 %v112
  %v319 = vunpack.c.h.b16 %v112
  %v320 = vunpack.c.l.b16 %v113
  %v321 = vunpack.c.h.b16 %v113
  %v322 = vunpack.c.l.b16 %v114
  %v323 = vunpack.c.h.b16 %v114
  %v324 = vunpack.c.l.b16 %v115
  %v325 = vunpack.c.h.b16 %v115
  %v326 = vunpack.c.l.b16 %v116
  %v327 = vunpack.c.h.b16 %v116
  %v328 = vunpack.c.l.b16 %v117
  %v329 = vunpack.c.h.b16 %v117
  %v330 = vpack.c.b16 %v206, %v202
  %v331 = vpack.c.b16 %v207, %v203
  %v332 = vpack.c.b16 %v208, %v204
  %v333 = vpack.c.b16 %v209, %v205
  %v334 = vpack.c.b16 %v214, %v210
  %v335 = vpack.c.b16 %v215, %v211
  %v336 = vpack.c.b16 %v216, %v212
  %v337 = vpack.c.b16 %v217, %v213
  %v338 = vpack.c.b16 %v222, %v218
  %v339 = vpack.c.b16 %v223, %v219
  %v340 = vpack.c.b16 %v224, %v220
  %v341 = vpack.c.b16 %v225, %v221
  %v342 = vpack.c.b16 %v230, %v226
  %v343 = vpack.c.b16 %v231, %v227
  %v344 = vpack.c.b16 %v232, %v228
  %v345 = vpack.c.b16 %v233, %v229
  %v346 = vpack.c.b16 %v238, %v234
  %v347 = vpack.c.b16 %v239, %v235
  %v348 = vpack.c.b16 %v240, %v236
  %v349 = vpack.c.b16 %v241, %v237
  %v350 = vpack.c.b16 %v246, %v242
  %v351 = vpack.c.b16 %v247, %v243
  %v352 = vpack.c.b16 %v248, %v244
  %v353 = vpack.c.b16 %v249, %v245
  %v354 = vpack.c.b16 %v254, %v250
  %v355 = vpack.c.b16 %v255, %v251
  %v356 = vpack.c.b16 %v256, %v252
  %v357 = vpack.c.b16 %v257, %v253
  %v358 = vpack.c.b16 %v262, %v258
  %v359 = vpack.c.b16 %v263, %v259
  %v360 = vpack.c.b16 %v264, %v260
  %v361 = vpack.c.b16 %v265, %v261
  %v362 = vpack.c.b16 %v270, %v266
  %v363 = vpack.c.b16 %v271, %v267
  %v364 = vpack.c.b16 %v272, %v268
  %v365 = vpack.c.b16 %v273, %v269
  %v366 = vpack.c.b16 %v278, %v274
  %v367 = vpack.c.b16 %v279, %v275
  %v368 = vpack.c.b16 %v280, %v276
  %v369 = vpack.c.b16 %v281, %v277
  %v370 = vpack.c.b16 %v286, %v282
  %v371 = vpack.c.b16 %v287, %v283
  %v372 = vpack.c.b16 %v288, %v284
  %v373 = vpack.c.b16 %v289, %v285
  %v374 = vpack.c.b16 %v294, %v290
  %v375 = vpack.c.b16 %v295, %v291
  %v376 = vpack.c.b16 %v296, %v292
  %v377 = vpack.c.b16 %v297, %v293
  %v378 = vpack.c.b16 %v302, %v298
  %v379 = vpack.c.b16 %v303, %v299
  %v380 = vpack.c.b16 %v304, %v300
  %v381 = vpack.c.b16 %v305, %v301
  %v382 = vpack.c.b16 %v310, %v306
  %v383 = vpack.c.b16 %v311, %v307
  %v384 = vpack.c.b16 %v312, %v308
  %v385 = vpack.c.b16 %v313, %v309
  %v386 = vpack.c.b16 %v318, %v314
  %v387 = vpack.c.b16 %v319, %v315
  %v388 = vpack.c.b16 %v320, %v316
  %v389 = vpack.c.b16 %v321, %v317
  %v390 = vpack.c.b16 %v326, %v322
  %v391 = vpack.c.b16 %v327, %v323
  %v392 = vpack.c.b16 %v328, %v324
  %v393 = vpack.c.b16 %v329, %v325
  %458 = vmatpush.bf16.msra.mxu0 %v358
  %459 = vmatpush.bf16.msra.mxu0 %v354
  %460 = vmatpush.bf16.msra.mxu0 %v350
  %461 = vmatpush.bf16.msra.mxu0 %v346
  %462 = vmatpush.bf16.msra.mxu0 %v342
  %463 = vmatpush.bf16.msra.mxu0 %v338
  %464 = vmatpush.bf16.msra.mxu0 %v334
  %465 = vmatpush.bf16.msra.mxu0 %v330
  %466 = vmatmul.bf16.gmra.mxu0 %v130
  %v467 = vpop.f32.mrf.mxu0
  %v468 = vadd.f32 0.0, %v467
  %v469 = vpop.f32.mrf.mxu0
  %v470 = vadd.f32 0.0, %v469
  %471 = vmatmul.bf16.gmra.mxu0 %v132
  %v472 = vpop.f32.mrf.mxu0
  %v473 = vadd.f32 0.0, %v472
  %v474 = vpop.f32.mrf.mxu0
  %v475 = vadd.f32 0.0, %v474
  %476 = vdwg.mxu0
  %477 = vmatpush.bf16.msra.mxu0 %v390
  %478 = vmatpush.bf16.msra.mxu0 %v386
  %479 = vmatpush.bf16.msra.mxu0 %v382
  %480 = vmatpush.bf16.msra.mxu0 %v378
  %481 = vmatpush.bf16.msra.mxu0 %v374
  %482 = vmatpush.bf16.msra.mxu0 %v370
  %483 = vmatpush.bf16.msra.mxu0 %v366
  %484 = vmatpush.bf16.msra.mxu0 %v362
  %485 = vmatmul.bf16.gmra.mxu0 %v131
  %v486 = vpop.f32.mrf.mxu0
  %v487 = vadd.f32 %v468, %v486
  %v488 = vpop.f32.mrf.mxu0
  %v489 = vadd.f32 %v470, %v488
  %490 = vmatmul.bf16.gmra.mxu0 %v133
  %v491 = vpop.f32.mrf.mxu0
  %v492 = vadd.f32 %v473, %v491
  %v493 = vpop.f32.mrf.mxu0
  %v494 = vadd.f32 %v475, %v493
  %495 = vdwg.mxu0
  %496 = vmatpush.bf16.msra.mxu0 %v359
  %497 = vmatpush.bf16.msra.mxu0 %v355
  %498 = vmatpush.bf16.msra.mxu0 %v351
  %499 = vmatpush.bf16.msra.mxu0 %v347
  %500 = vmatpush.bf16.msra.mxu0 %v343
  %501 = vmatpush.bf16.msra.mxu0 %v339
  %502 = vmatpush.bf16.msra.mxu0 %v335
  %503 = vmatpush.bf16.msra.mxu0 %v331
  %504 = vmatmul.bf16.gmra.mxu0 %v130
  %v505 = vpop.f32.mrf.mxu0
  %v506 = vadd.f32 0.0, %v505
  %v507 = vpop.f32.mrf.mxu0
  %v508 = vadd.f32 0.0, %v507
  %509 = vmatmul.bf16.gmra.mxu0 %v132
  %v510 = vpop.f32.mrf.mxu0
  %v511 = vadd.f32 0.0, %v510
  %v512 = vpop.f32.mrf.mxu0
  %v513 = vadd.f32 0.0, %v512
  %514 = vdwg.mxu0
  %515 = vmatpush.bf16.msra.mxu0 %v391
  %516 = vmatpush.bf16.msra.mxu0 %v387
  %517 = vmatpush.bf16.msra.mxu0 %v383
  %518 = vmatpush.bf16.msra.mxu0 %v379
  %519 = vmatpush.bf16.msra.mxu0 %v375
  %520 = vmatpush.bf16.msra.mxu0 %v371
  %521 = vmatpush.bf16.msra.mxu0 %v367
  %522 = vmatpush.bf16.msra.mxu0 %v363
  %523 = vmatmul.bf16.gmra.mxu0 %v131
  %v524 = vpop.f32.mrf.mxu0
  %v525 = vadd.f32 %v506, %v524
  %v526 = vpop.f32.mrf.mxu0
  %v527 = vadd.f32 %v508, %v526
  %528 = vmatmul.bf16.gmra.mxu0 %v133
  %v529 = vpop.f32.mrf.mxu0
  %v530 = vadd.f32 %v511, %v529
  %v531 = vpop.f32.mrf.mxu0
  %v532 = vadd.f32 %v513, %v531
  %533 = vdwg.mxu0
  %534 = vmatpush.bf16.msra.mxu0 %v360
  %535 = vmatpush.bf16.msra.mxu0 %v356
  %536 = vmatpush.bf16.msra.mxu0 %v352
  %537 = vmatpush.bf16.msra.mxu0 %v348
  %538 = vmatpush.bf16.msra.mxu0 %v344
  %539 = vmatpush.bf16.msra.mxu0 %v340
  %540 = vmatpush.bf16.msra.mxu0 %v336
  %541 = vmatpush.bf16.msra.mxu0 %v332
  %542 = vmatmul.bf16.gmra.mxu0 %v130
  %v543 = vpop.f32.mrf.mxu0
  %v544 = vadd.f32 0.0, %v543
  %v545 = vpop.f32.mrf.mxu0
  %v546 = vadd.f32 0.0, %v545
  %547 = vmatmul.bf16.gmra.mxu0 %v132
  %v548 = vpop.f32.mrf.mxu0
  %v549 = vadd.f32 0.0, %v548
  %v550 = vpop.f32.mrf.mxu0
  %v551 = vadd.f32 0.0, %v550
  %552 = vdwg.mxu0
  %553 = vmatpush.bf16.msra.mxu0 %v392
  %554 = vmatpush.bf16.msra.mxu0 %v388
  %555 = vmatpush.bf16.msra.mxu0 %v384
  %556 = vmatpush.bf16.msra.mxu0 %v380
  %557 = vmatpush.bf16.msra.mxu0 %v376
  %558 = vmatpush.bf16.msra.mxu0 %v372
  %559 = vmatpush.bf16.msra.mxu0 %v368
  %560 = vmatpush.bf16.msra.mxu0 %v364
  %561 = vmatmul.bf16.gmra.mxu0 %v131
  %v562 = vpop.f32.mrf.mxu0
  %v563 = vadd.f32 %v544, %v562
  %v564 = vpop.f32.mrf.mxu0
  %v565 = vadd.f32 %v546, %v564
  %566 = vmatmul.bf16.gmra.mxu0 %v133
  %v567 = vpop.f32.mrf.mxu0
  %v568 = vadd.f32 %v549, %v567
  %v569 = vpop.f32.mrf.mxu0
  %v570 = vadd.f32 %v551, %v569
  %571 = vdwg.mxu0
  %572 = vmatpush.bf16.msra.mxu0 %v361
  %573 = vmatpush.bf16.msra.mxu0 %v357
  %574 = vmatpush.bf16.msra.mxu0 %v353
  %575 = vmatpush.bf16.msra.mxu0 %v349
  %576 = vmatpush.bf16.msra.mxu0 %v345
  %577 = vmatpush.bf16.msra.mxu0 %v341
  %578 = vmatpush.bf16.msra.mxu0 %v337
  %579 = vmatpush.bf16.msra.mxu0 %v333
  %580 = vmatmul.bf16.gmra.mxu0 %v130
  %v581 = vpop.f32.mrf.mxu0
  %v582 = vadd.f32 0.0, %v581
  %v583 = vpop.f32.mrf.mxu0
  %v584 = vadd.f32 0.0, %v583
  %585 = vmatmul.bf16.gmra.mxu0 %v132
  %v586 = vpop.f32.mrf.mxu0
  %v587 = vadd.f32 0.0, %v586
  %v588 = vpop.f32.mrf.mxu0
  %v589 = vadd.f32 0.0, %v588
  %590 = vdwg.mxu0
  %591 = vmatpush.bf16.msra.mxu0 %v393
  %592 = vmatpush.bf16.msra.mxu0 %v389
  %593 = vmatpush.bf16.msra.mxu0 %v385
  %594 = vmatpush.bf16.msra.mxu0 %v381
  %595 = vmatpush.bf16.msra.mxu0 %v377
  %596 = vmatpush.bf16.msra.mxu0 %v373
  %597 = vmatpush.bf16.msra.mxu0 %v369
  %598 = vmatpush.bf16.msra.mxu0 %v365
  %599 = vmatmul.bf16.gmra.mxu0 %v131
  %v600 = vpop.f32.mrf.mxu0
  %v601 = vadd.f32 %v582, %v600
  %v602 = vpop.f32.mrf.mxu0
  %v603 = vadd.f32 %v584, %v602
  %604 = vmatmul.bf16.gmra.mxu0 %v133
  %v605 = vpop.f32.mrf.mxu0
  %v606 = vadd.f32 %v587, %v605
  %v607 = vpop.f32.mrf.mxu0
  %v608 = vadd.f32 %v589, %v607
  %609 = vdwg.mxu0
  %v610 = vadd.f32 %v34, %v487
  %v611 = vadd.f32 %v35, %v525
  %v612 = vadd.f32 %v36, %v563
  %v613 = vadd.f32 %v37, %v601
  %v614 = vadd.f32 %v38, %v489
  %v615 = vadd.f32 %v39, %v527
  %v616 = vadd.f32 %v40, %v565
  %v617 = vadd.f32 %v41, %v603
  %v618 = vadd.f32 %v42, %v492
  %v619 = vadd.f32 %v43, %v530
  %v620 = vadd.f32 %v44, %v568
  %v621 = vadd.f32 %v45, %v606
  %v622 = vadd.f32 %v46, %v494
  %v623 = vadd.f32 %v47, %v532
  %v624 = vadd.f32 %v48, %v570
  %v625 = vadd.f32 %v49, %v608
  %626 = vst [vmem:[#allocation2] sm:$0xff] %v610
  %627 = vst [vmem:[#allocation2 + $0x8] sm:$0xff] %v611
  %628 = vst [vmem:[#allocation2 + $0x10] sm:$0xff] %v612
  %629 = vst [vmem:[#allocation2 + $0x18] sm:$0xff] %v613
  %630 = vst [vmem:[#allocation2 + $0x20] sm:$0xff] %v614
  %631 = vst [vmem:[#allocation2 + $0x28] sm:$0xff] %v615
  %632 = vst [vmem:[#allocation2 + $0x30] sm:$0xff] %v616
  %633 = vst [vmem:[#allocation2 + $0x38] sm:$0xff] %v617
  %634 = vst [vmem:[#allocation2 + $0x40] sm:$0xff] %v618
  %635 = vst [vmem:[#allocation2 + $0x48] sm:$0xff] %v619
  %636 = vst [vmem:[#allocation2 + $0x50] sm:$0xff] %v620
  %637 = vst [vmem:[#allocation2 + $0x58] sm:$0xff] %v621
  %638 = vst [vmem:[#allocation2 + $0x60] sm:$0xff] %v622
  %639 = vst [vmem:[#allocation2 + $0x68] sm:$0xff] %v623
  %640 = vst [vmem:[#allocation2 + $0x70] sm:$0xff] %v624
  %641 = vst [vmem:[#allocation2 + $0x78] sm:$0xff] %v625
  // Predicated region
  $region18: #{nature_cnn_forward.4} parent=0 // pred_check
    %p642 = pneg %p14
  $region19: #{nature_cnn_forward.4} parent=0 // pred_check_branch
    %644 = sbr.rel (%p642) target = $region21
  $region20: #{nature_cnn_forward.4} parent=0 // pred_region
    %v645 = vld [vmem:[#allocation2] sm:$0xff]
    %v646 = vld [vmem:[#allocation2 + $0x8] sm:$0xff]
    %v647 = vld [vmem:[#allocation2 + $0x10] sm:$0xff]
    %v648 = vld [vmem:[#allocation2 + $0x18] sm:$0xff]
    %v649 = vld [vmem:[#allocation2 + $0x20] sm:$0xff]
    %v650 = vld [vmem:[#allocation2 + $0x28] sm:$0xff]
    %v651 = vld [vmem:[#allocation2 + $0x30] sm:$0xff]
    %v652 = vld [vmem:[#allocation2 + $0x38] sm:$0xff]
    %v653 = vld [vmem:[#allocation2 + $0x40] sm:$0xff]
    %v654 = vld [vmem:[#allocation2 + $0x48] sm:$0xff]
    %v655 = vld [vmem:[#allocation2 + $0x50] sm:$0xff]
    %v656 = vld [vmem:[#allocation2 + $0x58] sm:$0xff]
    %v657 = vld [vmem:[#allocation2 + $0x60] sm:$0xff]
    %v658 = vld [vmem:[#allocation2 + $0x68] sm:$0xff]
    %v659 = vld [vmem:[#allocation2 + $0x70] sm:$0xff]
    %v660 = vld [vmem:[#allocation2 + $0x78] sm:$0xff]
    %v661 = vld [vmem:[%s2] sm:$0xff]
    %v662 = vld [vmem:[%s2 + $0x8] sm:$0xff]
    %v663 = vld [vmem:[%s2 + $0x10] sm:$0xff]
    %v664 = vld [vmem:[%s2 + $0x18] sm:$0xff]
    %666 = vset.pattern.permute.xlu0 0
    %667 = vperm.xlu0 %666, %v661
    %v668 = vpop.permute.xlu0 %667
    %671 = vset.pattern.permute.xlu0 0
    %672 = vperm.xlu0 %671, %v662
    %v673 = vpop.permute.xlu0 %672
    %676 = vset.pattern.permute.xlu0 0
    %677 = vperm.xlu0 %676, %v663
    %v678 = vpop.permute.xlu0 %677
    %681 = vset.pattern.permute.xlu0 0
    %682 = vperm.xlu0 %681, %v664
    %v683 = vpop.permute.xlu0 %682
    %v685 = vadd.f32 %v645, %v668
    %v686 = vadd.f32 %v646, %v668
    %v687 = vadd.f32 %v647, %v668
    %v688 = vadd.f32 %v648, %v668
    %v689 = vadd.f32 %v649, %v673
    %v690 = vadd.f32 %v650, %v673
    %v691 = vadd.f32 %v651, %v673
    %v692 = vadd.f32 %v652, %v673
    %v693 = vadd.f32 %v653, %v678
    %v694 = vadd.f32 %v654, %v678
    %v695 = vadd.f32 %v655, %v678
    %v696 = vadd.f32 %v656, %v678
    %v697 = vadd.f32 %v657, %v683
    %v698 = vadd.f32 %v658, %v683
    %v699 = vadd.f32 %v659, %v683
    %v700 = vadd.f32 %v660, %v683
    %v701 = vmax.f32 %v685, 0.0
    %v702 = vmax.f32 %v686, 0.0
    %v703 = vmax.f32 %v687, 0.0
    %v704 = vmax.f32 %v688, 0.0
    %v705 = vmax.f32 %v689, 0.0
    %v706 = vmax.f32 %v690, 0.0
    %v707 = vmax.f32 %v691, 0.0
    %v708 = vmax.f32 %v692, 0.0
    %v709 = vmax.f32 %v693, 0.0
    %v710 = vmax.f32 %v694, 0.0
    %v711 = vmax.f32 %v695, 0.0
    %v712 = vmax.f32 %v696, 0.0
    %v713 = vmax.f32 %v697, 0.0
    %v714 = vmax.f32 %v698, 0.0
    %v715 = vmax.f32 %v699, 0.0
    %v716 = vmax.f32 %v700, 0.0
    %v717 = vpack.c.bf16 %v702, %v701
    %v718 = vpack.c.bf16 %v704, %v703
    %v719 = vpack.c.bf16 %v706, %v705
    %v720 = vpack.c.bf16 %v708, %v707
    %v721 = vpack.c.bf16 %v710, %v709
    %v722 = vpack.c.bf16 %v712, %v711
    %v723 = vpack.c.bf16 %v714, %v713
    %v724 = vpack.c.bf16 %v716, %v715
    %725 = vst [vmem:[%s3] sm:$0xff] %v717
    %726 = vst [vmem:[%s3 + $0x8] sm:$0xff] %v718
    %727 = vst [vmem:[%s3 + $0x10] sm:$0xff] %v719
    %728 = vst [vmem:[%s3 + $0x18] sm:$0xff] %v720
    %729 = vst [vmem:[%s3 + $0x20] sm:$0xff] %v721
    %730 = vst [vmem:[%s3 + $0x28] sm:$0xff] %v722
    %731 = vst [vmem:[%s3 + $0x30] sm:$0xff] %v723
    %732 = vst [vmem:[%s3 + $0x38] sm:$0xff] %v724
  $region21: #{nature_cnn_forward.4} parent=0 // pred_fallthru
    _
  // Predicated region
  $region22: #{nature_cnn_forward.4} parent=0 // pred_check
    _
  $region23: #{nature_cnn_forward.4} parent=0 // pred_check_branch
    %734 = sbr.rel (0) target = $region25
  $region24: #{nature_cnn_forward.4} parent=0 // pred_region
    _
  $region25: #{nature_cnn_forward.4} parent=0 // pred_fallthru
    _
  // Predicated region
  $region26: #{nature_cnn_forward.4} parent=0 // pred_check
    _
  $region27: #{nature_cnn_forward.4} parent=0 // pred_check_branch
    %736 = sbr.rel (0) target = $region29
  $region28: #{nature_cnn_forward.4} parent=0 // pred_region
    _
  $region29: #{nature_cnn_forward.4} parent=0 // pred_fallthru
    _

// kernel: nature_cnn_forward.5
$region0: #{nature_cnn_forward.5}
  #allocation0 [shape = 'u32[]', space=smem, size = 0x4, offset = 0x4, fixed_abs, tag = 'smem constant byte address 0x4 - core index']
  #allocation1 [shape = 'u32[72,128]{1,0:T(1,128)}', space=vmem, size = 0x9000, scoped, tag = 'internal scratch']
  #allocation2 [shape = 'f32[64,72]{1,0:T(8,128)}', space=vmem, size = 0x8000, scoped, tag = 'scratch operand']
  %s0 = inlined_call_operand.vmem [shape: bf16[64,512], index: 0, kind: input, shape index: {}]
  %s1 = inlined_call_operand.vmem [shape: bf16[512,72], index: 1, kind: input, shape index: {}]
  %s2 = inlined_call_operand.vmem [shape: f32[64,1], index: 2, kind: input, shape index: {}]
  %s3 = inlined_call_operand.vmem [shape: bf16[64,72], index: 3, kind: output, shape index: {}]
  %s4 = sld [smem:[#allocation0]]
  $region30: #{nature_cnn_forward.5} parent=0
    _
  %s6 = ssub.s32 1, %s4
  %s7 = scalar_select 0, %s6, %s4
  // Predicated region
  $region2: #{nature_cnn_forward.5} parent=0 // pred_check
    _
  $region3: #{nature_cnn_forward.5} parent=0 // pred_check_branch
    %9 = sbr.rel (0) target = $region5
  $region4: #{nature_cnn_forward.5} parent=0 // pred_region
    _
  $region5: #{nature_cnn_forward.5} parent=0 // pred_fallthru
    _
  // Predicated region
  $region6: #{nature_cnn_forward.5} parent=0 // pred_check
    _
  $region7: #{nature_cnn_forward.5} parent=0 // pred_check_branch
    %11 = sbr.rel (0) target = $region9
  $region8: #{nature_cnn_forward.5} parent=0 // pred_region
    _
  $region9: #{nature_cnn_forward.5} parent=0 // pred_fallthru
    _
  // Predicated region
  $region10: #{nature_cnn_forward.5} parent=0 // pred_check
    _
  $region11: #{nature_cnn_forward.5} parent=0 // pred_check_branch
    %13 = sbr.rel (0) target = $region13
  $region12: #{nature_cnn_forward.5} parent=0 // pred_region
    _
  $region13: #{nature_cnn_forward.5} parent=0 // pred_fallthru
    _
  %p14 = scmp.eq.s32.totalorder 0, 0
  // Predicated region
  $region14: #{nature_cnn_forward.5} parent=0 // pred_check
    %p15 = pneg %p14
  $region15: #{nature_cnn_forward.5} parent=0 // pred_check_branch
    %17 = sbr.rel (%p15) target = $region17
  $region16: #{nature_cnn_forward.5} parent=0 // pred_region
    %vm18 = vcmask 588800
    %19 = vst.msk [vmem:[#allocation2] sm:$0xff] %vm18, 0.0
    %20 = vst.msk [vmem:[#allocation2 + $0x8] sm:$0xff] %vm18, 0.0
    %21 = vst.msk [vmem:[#allocation2 + $0x10] sm:$0xff] %vm18, 0.0
    %22 = vst.msk [vmem:[#allocation2 + $0x18] sm:$0xff] %vm18, 0.0
    %23 = vst.msk [vmem:[#allocation2 + $0x20] sm:$0xff] %vm18, 0.0
    %24 = vst.msk [vmem:[#allocation2 + $0x28] sm:$0xff] %vm18, 0.0
    %25 = vst.msk [vmem:[#allocation2 + $0x30] sm:$0xff] %vm18, 0.0
    %26 = vst.msk [vmem:[#allocation2 + $0x38] sm:$0xff] %vm18, 0.0
  $region17: #{nature_cnn_forward.5} parent=0 // pred_fallthru
    _
  %v27 = vld [vmem:[#allocation2] sm:$0xff]
  %v28 = vld [vmem:[#allocation2 + $0x8] sm:$0xff]
  %v29 = vld [vmem:[#allocation2 + $0x10] sm:$0xff]
  %v30 = vld [vmem:[#allocation2 + $0x18] sm:$0xff]
  %v31 = vld [vmem:[#allocation2 + $0x20] sm:$0xff]
  %v32 = vld [vmem:[#allocation2 + $0x28] sm:$0xff]
  %v33 = vld [vmem:[#allocation2 + $0x30] sm:$0xff]
  %v34 = vld [vmem:[#allocation2 + $0x38] sm:$0xff]
  %v35 = vld [vmem:[%s0] sm:$0xff]
  %v36 = vld [vmem:[%s0 + $0x8] sm:$0xff]
  %v37 = vld [vmem:[%s0 + $0x10] sm:$0xff]
  %v38 = vld [vmem:[%s0 + $0x18] sm:$0xff]
  %v39 = vld [vmem:[%s0 + $0x20] sm:$0xff]
  %v40 = vld [vmem:[%s0 + $0x28] sm:$0xff]
  %v41 = vld [vmem:[%s0 + $0x30] sm:$0xff]
  %v42 = vld [vmem:[%s0 + $0x38] sm:$0xff]
  %v43 = vld [vmem:[%s0 + $0x40] sm:$0xff]
  %v44 = vld [vmem:[%s0 + $0x48] sm:$0xff]
  %v45 = vld [vmem:[%s0 + $0x50] sm:$0xff]
  %v46 = vld [vmem:[%s0 + $0x58] sm:$0xff]
  %v47 = vld [vmem:[%s0 + $0x60] sm:$0xff]
  %v48 = vld [vmem:[%s0 + $0x68] sm:$0xff]
  %v49 = vld [vmem:[%s0 + $0x70] sm:$0xff]
  %v50 = vld [vmem:[%s0 + $0x78] sm:$0xff]
  %v51 = vld [vmem:[%s1] sm:$0xf]
  %v52 = vld [vmem:[%s1 + $0x4] sm:$0xf]
  %v53 = vld [vmem:[%s1 + $0x8] sm:$0xf]
  %v54 = vld [vmem:[%s1 + $0xc] sm:$0xf]
  %v55 = vld [vmem:[%s1 + $0x10] sm:$0xf]
  %v56 = vld [vmem:[%s1 + $0x14] sm:$0xf]
  %v57 = vld [vmem:[%s1 + $0x18] sm:$0xf]
  %v58 = vld [vmem:[%s1 + $0x1c] sm:$0xf]
  %v59 = vld [vmem:[%s1 + $0x20] sm:$0xf]
  %v60 = vld [vmem:[%s1 + $0x24] sm:$0xf]
  %v61 = vld [vmem:[%s1 + $0x28] sm:$0xf]
  %v62 = vld [vmem:[%s1 + $0x2c] sm:$0xf]
  %v63 = vld [vmem:[%s1 + $0x30] sm:$0xf]
  %v64 = vld [vmem:[%s1 + $0x34] sm:$0xf]
  %v65 = vld [vmem:[%s1 + $0x38] sm:$0xf]
  %v66 = vld [vmem:[%s1 + $0x3c] sm:$0xf]
  %v67 = vld [vmem:[%s1 + $0x40] sm:$0xf]
  %v68 = vld [vmem:[%s1 + $0x44] sm:$0xf]
  %v69 = vld [vmem:[%s1 + $0x48] sm:$0xf]
  %v70 = vld [vmem:[%s1 + $0x4c] sm:$0xf]
  %v71 = vld [vmem:[%s1 + $0x50] sm:$0xf]
  %v72 = vld [vmem:[%s1 + $0x54] sm:$0xf]
  %v73 = vld [vmem:[%s1 + $0x58] sm:$0xf]
  %v74 = vld [vmem:[%s1 + $0x5c] sm:$0xf]
  %v75 = vld [vmem:[%s1 + $0x60] sm:$0xf]
  %v76 = vld [vmem:[%s1 + $0x64] sm:$0xf]
  %v77 = vld [vmem:[%s1 + $0x68] sm:$0xf]
  %v78 = vld [vmem:[%s1 + $0x6c] sm:$0xf]
  %v79 = vld [vmem:[%s1 + $0x70] sm:$0xf]
  %v80 = vld [vmem:[%s1 + $0x74] sm:$0xf]
  %v81 = vld [vmem:[%s1 + $0x78] sm:$0xf]
  %v82 = vld [vmem:[%s1 + $0x7c] sm:$0xf]
  %v83 = vld [vmem:[%s1 + $0x80] sm:$0xf]
  %v84 = vld [vmem:[%s1 + $0x84] sm:$0xf]
  %v85 = vld [vmem:[%s1 + $0x88] sm:$0xf]
  %v86 = vld [vmem:[%s1 + $0x8c] sm:$0xf]
  %v87 = vld [vmem:[%s1 + $0x90] sm:$0xf]
  %v88 = vld [vmem:[%s1 + $0x94] sm:$0xf]
  %v89 = vld [vmem:[%s1 + $0x98] sm:$0xf]
  %v90 = vld [vmem:[%s1 + $0x9c] sm:$0xf]
  %v91 = vld [vmem:[%s1 + $0xa0] sm:$0xf]
  %v92 = vld [vmem:[%s1 + $0xa4] sm:$0xf]
  %v93 = vld [vmem:[%s1 + $0xa8] sm:$0xf]
  %v94 = vld [vmem:[%s1 + $0xac] sm:$0xf]
  %v95 = vld [vmem:[%s1 + $0xb0] sm:$0xf]
  %v96 = vld [vmem:[%s1 + $0xb4] sm:$0xf]
  %v97 = vld [vmem:[%s1 + $0xb8] sm:$0xf]
  %v98 = vld [vmem:[%s1 + $0xbc] sm:$0xf]
  %v99 = vld [vmem:[%s1 + $0xc0] sm:$0xf]
  %v100 = vld [vmem:[%s1 + $0xc4] sm:$0xf]
  %v101 = vld [vmem:[%s1 + $0xc8] sm:$0xf]
  %v102 = vld [vmem:[%s1 + $0xcc] sm:$0xf]
  %v103 = vld [vmem:[%s1 + $0xd0] sm:$0xf]
  %v104 = vld [vmem:[%s1 + $0xd4] sm:$0xf]
  %v105 = vld [vmem:[%s1 + $0xd8] sm:$0xf]
  %v106 = vld [vmem:[%s1 + $0xdc] sm:$0xf]
  %v107 = vld [vmem:[%s1 + $0xe0] sm:$0xf]
  %v108 = vld [vmem:[%s1 + $0xe4] sm:$0xf]
  %v109 = vld [vmem:[%s1 + $0xe8] sm:$0xf]
  %v110 = vld [vmem:[%s1 + $0xec] sm:$0xf]
  %v111 = vld [vmem:[%s1 + $0xf0] sm:$0xf]
  %v112 = vld [vmem:[%s1 + $0xf4] sm:$0xf]
  %v113 = vld [vmem:[%s1 + $0xf8] sm:$0xf]
  %v114 = vld [vmem:[%s1 + $0xfc] sm:$0xf]
  %v131 = vunpack.c.l.b16 %v35
  %v132 = vunpack.c.h.b16 %v35
  %v133 = vunpack.c.l.b16 %v36
  %v134 = vunpack.c.h.b16 %v36
  %v135 = vunpack.c.l.b16 %v37
  %v136 = vunpack.c.h.b16 %v37
  %v137 = vunpack.c.l.b16 %v38
  %v138 = vunpack.c.h.b16 %v38
  %v139 = vunpack.c.l.b16 %v39
  %v140 = vunpack.c.h.b16 %v39
  %v141 = vunpack.c.l.b16 %v40
  %v142 = vunpack.c.h.b16 %v40
  %v143 = vunpack.c.l.b16 %v41
  %v144 = vunpack.c.h.b16 %v41
  %v145 = vunpack.c.l.b16 %v42
  %v146 = vunpack.c.h.b16 %v42
  %v147 = vunpack.c.l.b16 %v43
  %v148 = vunpack.c.h.b16 %v43
  %v149 = vunpack.c.l.b16 %v44
  %v150 = vunpack.c.h.b16 %v44
  %v151 = vunpack.c.l.b16 %v45
  %v152 = vunpack.c.h.b16 %v45
  %v153 = vunpack.c.l.b16 %v46
  %v154 = vunpack.c.h.b16 %v46
  %v155 = vunpack.c.l.b16 %v47
  %v156 = vunpack.c.h.b16 %v47
  %v157 = vunpack.c.l.b16 %v48
  %v158 = vunpack.c.h.b16 %v48
  %v159 = vunpack.c.l.b16 %v49
  %v160 = vunpack.c.h.b16 %v49
  %v161 = vunpack.c.l.b16 %v50
  %v162 = vunpack.c.h.b16 %v50
  %v163 = vpack.c.b16 %v135, %v131
  %v164 = vpack.c.b16 %v136, %v132
  %v165 = vpack.c.b16 %v137, %v133
  %v166 = vpack.c.b16 %v138, %v134
  %v167 = vpack.c.b16 %v143, %v139
  %v168 = vpack.c.b16 %v144, %v140
  %v169 = vpack.c.b16 %v145, %v141
  %v170 = vpack.c.b16 %v146, %v142
  %v171 = vpack.c.b16 %v151, %v147
  %v172 = vpack.c.b16 %v152, %v148
  %v173 = vpack.c.b16 %v153, %v149
  %v174 = vpack.c.b16 %v154, %v150
  %v175 = vpack.c.b16 %v159, %v155
  %v176 = vpack.c.b16 %v160, %v156
  %v177 = vpack.c.b16 %v161, %v157
  %v178 = vpack.c.b16 %v162, %v158
  %v259 = vunpack.c.l.b16 %v51
  %v260 = vunpack.c.l.b16 %v52
  %v261 = vunpack.c.l.b16 %v53
  %v262 = vunpack.c.l.b16 %v54
  %v263 = vunpack.c.l.b16 %v55
  %v264 = vunpack.c.l.b16 %v56
  %v265 = vunpack.c.l.b16 %v57
  %v266 = vunpack.c.l.b16 %v58
  %v267 = vunpack.c.l.b16 %v59
  %v268 = vunpack.c.l.b16 %v60
  %v269 = vunpack.c.l.b16 %v61
  %v270 = vunpack.c.l.b16 %v62
  %v271 = vunpack.c.l.b16 %v63
  %v272 = vunpack.c.l.b16 %v64
  %v273 = vunpack.c.l.b16 %v65
  %v274 = vunpack.c.l.b16 %v66
  %v275 = vunpack.c.l.b16 %v67
  %v276 = vunpack.c.l.b16 %v68
  %v277 = vunpack.c.l.b16 %v69
  %v278 = vunpack.c.l.b16 %v70
  %v279 = vunpack.c.l.b16 %v71
  %v280 = vunpack.c.l.b16 %v72
  %v281 = vunpack.c.l.b16 %v73
  %v282 = vunpack.c.l.b16 %v74
  %v283 = vunpack.c.l.b16 %v75
  %v284 = vunpack.c.l.b16 %v76
  %v285 = vunpack.c.l.b16 %v77
  %v286 = vunpack.c.l.b16 %v78
  %v287 = vunpack.c.l.b16 %v79
  %v288 = vunpack.c.l.b16 %v80
  %v289 = vunpack.c.l.b16 %v81
  %v290 = vunpack.c.l.b16 %v82
  %v291 = vunpack.c.l.b16 %v83
  %v292 = vunpack.c.l.b16 %v84
  %v293 = vunpack.c.l.b16 %v85
  %v294 = vunpack.c.l.b16 %v86
  %v295 = vunpack.c.l.b16 %v87
  %v296 = vunpack.c.l.b16 %v88
  %v297 = vunpack.c.l.b16 %v89
  %v298 = vunpack.c.l.b16 %v90
  %v299 = vunpack.c.l.b16 %v91
  %v300 = vunpack.c.l.b16 %v92
  %v301 = vunpack.c.l.b16 %v93
  %v302 = vunpack.c.l.b16 %v94
  %v303 = vunpack.c.l.b16 %v95
  %v304 = vunpack.c.l.b16 %v96
  %v305 = vunpack.c.l.b16 %v97
  %v306 = vunpack.c.l.b16 %v98
  %v307 = vunpack.c.l.b16 %v99
  %v308 = vunpack.c.l.b16 %v100
  %v309 = vunpack.c.l.b16 %v101
  %v310 = vunpack.c.l.b16 %v102
  %v311 = vunpack.c.l.b16 %v103
  %v312 = vunpack.c.l.b16 %v104
  %v313 = vunpack.c.l.b16 %v105
  %v314 = vunpack.c.l.b16 %v106
  %v315 = vunpack.c.l.b16 %v107
  %v316 = vunpack.c.l.b16 %v108
  %v317 = vunpack.c.l.b16 %v109
  %v318 = vunpack.c.l.b16 %v110
  %v319 = vunpack.c.l.b16 %v111
  %v320 = vunpack.c.l.b16 %v112
  %v321 = vunpack.c.l.b16 %v113
  %v322 = vunpack.c.l.b16 %v114
  %v323 = vpack.c.b16 %v260, %v259
  %v324 = vpack.c.b16 %v262, %v261
  %v325 = vpack.c.b16 %v264, %v263
  %v326 = vpack.c.b16 %v266, %v265
  %v327 = vpack.c.b16 %v268, %v267
  %v328 = vpack.c.b16 %v270, %v269
  %v329 = vpack.c.b16 %v272, %v271
  %v330 = vpack.c.b16 %v274, %v273
  %v331 = vpack.c.b16 %v276, %v275
  %v332 = vpack.c.b16 %v278, %v277
  %v333 = vpack.c.b16 %v280, %v279
  %v334 = vpack.c.b16 %v282, %v281
  %v335 = vpack.c.b16 %v284, %v283
  %v336 = vpack.c.b16 %v286, %v285
  %v337 = vpack.c.b16 %v288, %v287
  %v338 = vpack.c.b16 %v290, %v289
  %v339 = vpack.c.b16 %v292, %v291
  %v340 = vpack.c.b16 %v294, %v293
  %v341 = vpack.c.b16 %v296, %v295
  %v342 = vpack.c.b16 %v298, %v297
  %v343 = vpack.c.b16 %v300, %v299
  %v344 = vpack.c.b16 %v302, %v301
  %v345 = vpack.c.b16 %v304, %v303
  %v346 = vpack.c.b16 %v306, %v305
  %v347 = vpack.c.b16 %v308, %v307
  %v348 = vpack.c.b16 %v310, %v309
  %v349 = vpack.c.b16 %v312, %v311
  %v350 = vpack.c.b16 %v314, %v313
  %v351 = vpack.c.b16 %v316, %v315
  %v352 = vpack.c.b16 %v318, %v317
  %v353 = vpack.c.b16 %v320, %v319
  %v354 = vpack.c.b16 %v322, %v321
  %387 = vmatpush.bf16.msra.mxu0 %v330
  %388 = vmatpush.bf16.msra.mxu0 %v329
  %389 = vmatpush.bf16.msra.mxu0 %v328
  %390 = vmatpush.bf16.msra.mxu0 %v327
  %391 = vmatpush.bf16.msra.mxu0 %v326
  %392 = vmatpush.bf16.msra.mxu0 %v325
  %393 = vmatpush.bf16.msra.mxu0 %v324
  %394 = vmatpush.bf16.msra.mxu0 %v323
  %395 = vmatmul.bf16.gmra.mxu0 %v163
  %v396 = vpop.f32.mrf.mxu0
  %v397 = vadd.f32 0.0, %v396
  %v398 = vpop.f32.mrf.mxu0
  %v399 = vadd.f32 0.0, %v398
  %400 = vmatmul.bf16.gmra.mxu0 %v167
  %v401 = vpop.f32.mrf.mxu0
  %v402 = vadd.f32 0.0, %v401
  %v403 = vpop.f32.mrf.mxu0
  %v404 = vadd.f32 0.0, %v403
  %405 = vmatmul.bf16.gmra.mxu0 %v171
  %v406 = vpop.f32.mrf.mxu0
  %v407 = vadd.f32 0.0, %v406
  %v408 = vpop.f32.mrf.mxu0
  %v409 = vadd.f32 0.0, %v408
  %410 = vmatmul.bf16.gmra.mxu0 %v175
  %v411 = vpop.f32.mrf.mxu0
  %v412 = vadd.f32 0.0, %v411
  %v413 = vpop.f32.mrf.mxu0
  %v414 = vadd.f32 0.0, %v413
  %415 = vdwg.mxu0
  %416 = vmatpush.bf16.msra.mxu0 %v338
  %417 = vmatpush.bf16.msra.mxu0 %v337
  %418 = vmatpush.bf16.msra.mxu0 %v336
  %419 = vmatpush.bf16.msra.mxu0 %v335
  %420 = vmatpush.bf16.msra.mxu0 %v334
  %421 = vmatpush.bf16.msra.mxu0 %v333
  %422 = vmatpush.bf16.msra.mxu0 %v332
  %423 = vmatpush.bf16.msra.mxu0 %v331
  %424 = vmatmul.bf16.gmra.mxu0 %v164
  %v425 = vpop.f32.mrf.mxu0
  %v426 = vadd.f32 %v397, %v425
  %v427 = vpop.f32.mrf.mxu0
  %v428 = vadd.f32 %v399, %v427
  %429 = vmatmul.bf16.gmra.mxu0 %v168
  %v430 = vpop.f32.mrf.mxu0
  %v431 = vadd.f32 %v402, %v430
  %v432 = vpop.f32.mrf.mxu0
  %v433 = vadd.f32 %v404, %v432
  %434 = vmatmul.bf16.gmra.mxu0 %v172
  %v435 = vpop.f32.mrf.mxu0
  %v436 = vadd.f32 %v407, %v435
  %v437 = vpop.f32.mrf.mxu0
  %v438 = vadd.f32 %v409, %v437
  %439 = vmatmul.bf16.gmra.mxu0 %v176
  %v440 = vpop.f32.mrf.mxu0
  %v441 = vadd.f32 %v412, %v440
  %v442 = vpop.f32.mrf.mxu0
  %v443 = vadd.f32 %v414, %v442
  %444 = vdwg.mxu0
  %445 = vmatpush.bf16.msra.mxu0 %v346
  %446 = vmatpush.bf16.msra.mxu0 %v345
  %447 = vmatpush.bf16.msra.mxu0 %v344
  %448 = vmatpush.bf16.msra.mxu0 %v343
  %449 = vmatpush.bf16.msra.mxu0 %v342
  %450 = vmatpush.bf16.msra.mxu0 %v341
  %451 = vmatpush.bf16.msra.mxu0 %v340
  %452 = vmatpush.bf16.msra.mxu0 %v339
  %453 = vmatmul.bf16.gmra.mxu0 %v165
  %v454 = vpop.f32.mrf.mxu0
  %v455 = vadd.f32 %v426, %v454
  %v456 = vpop.f32.mrf.mxu0
  %v457 = vadd.f32 %v428, %v456
  %458 = vmatmul.bf16.gmra.mxu0 %v169
  %v459 = vpop.f32.mrf.mxu0
  %v460 = vadd.f32 %v431, %v459
  %v461 = vpop.f32.mrf.mxu0
  %v462 = vadd.f32 %v433, %v461
  %463 = vmatmul.bf16.gmra.mxu0 %v173
  %v464 = vpop.f32.mrf.mxu0
  %v465 = vadd.f32 %v436, %v464
  %v466 = vpop.f32.mrf.mxu0
  %v467 = vadd.f32 %v438, %v466
  %468 = vmatmul.bf16.gmra.mxu0 %v177
  %v469 = vpop.f32.mrf.mxu0
  %v470 = vadd.f32 %v441, %v469
  %v471 = vpop.f32.mrf.mxu0
  %v472 = vadd.f32 %v443, %v471
  %473 = vdwg.mxu0
  %474 = vmatpush.bf16.msra.mxu0 %v354
  %475 = vmatpush.bf16.msra.mxu0 %v353
  %476 = vmatpush.bf16.msra.mxu0 %v352
  %477 = vmatpush.bf16.msra.mxu0 %v351
  %478 = vmatpush.bf16.msra.mxu0 %v350
  %479 = vmatpush.bf16.msra.mxu0 %v349
  %480 = vmatpush.bf16.msra.mxu0 %v348
  %481 = vmatpush.bf16.msra.mxu0 %v347
  %482 = vmatmul.bf16.gmra.mxu0 %v166
  %v483 = vpop.f32.mrf.mxu0
  %v484 = vadd.f32 %v455, %v483
  %v485 = vpop.f32.mrf.mxu0
  %v486 = vadd.f32 %v457, %v485
  %487 = vmatmul.bf16.gmra.mxu0 %v170
  %v488 = vpop.f32.mrf.mxu0
  %v489 = vadd.f32 %v460, %v488
  %v490 = vpop.f32.mrf.mxu0
  %v491 = vadd.f32 %v462, %v490
  %492 = vmatmul.bf16.gmra.mxu0 %v174
  %v493 = vpop.f32.mrf.mxu0
  %v494 = vadd.f32 %v465, %v493
  %v495 = vpop.f32.mrf.mxu0
  %v496 = vadd.f32 %v467, %v495
  %497 = vmatmul.bf16.gmra.mxu0 %v178
  %v498 = vpop.f32.mrf.mxu0
  %v499 = vadd.f32 %v470, %v498
  %v500 = vpop.f32.mrf.mxu0
  %v501 = vadd.f32 %v472, %v500
  %502 = vdwg.mxu0
  %v503 = vadd.f32 %v27, %v484
  %v504 = vadd.f32 %v28, %v486
  %v505 = vadd.f32 %v29, %v489
  %v506 = vadd.f32 %v30, %v491
  %v507 = vadd.f32 %v31, %v494
  %v508 = vadd.f32 %v32, %v496
  %v509 = vadd.f32 %v33, %v499
  %v510 = vadd.f32 %v34, %v501
  %vm511 = vcmask 588800
  %512 = vst.msk [vmem:[#allocation2] sm:$0xff] %vm511, %v503
  %513 = vst.msk [vmem:[#allocation2 + $0x8] sm:$0xff] %vm511, %v504
  %514 = vst.msk [vmem:[#allocation2 + $0x10] sm:$0xff] %vm511, %v505
  %515 = vst.msk [vmem:[#allocation2 + $0x18] sm:$0xff] %vm511, %v506
  %516 = vst.msk [vmem:[#allocation2 + $0x20] sm:$0xff] %vm511, %v507
  %517 = vst.msk [vmem:[#allocation2 + $0x28] sm:$0xff] %vm511, %v508
  %518 = vst.msk [vmem:[#allocation2 + $0x30] sm:$0xff] %vm511, %v509
  %519 = vst.msk [vmem:[#allocation2 + $0x38] sm:$0xff] %vm511, %v510
  // Predicated region
  $region18: #{nature_cnn_forward.5} parent=0 // pred_check
    %p520 = pneg %p14
  $region19: #{nature_cnn_forward.5} parent=0 // pred_check_branch
    %522 = sbr.rel (%p520) target = $region21
  $region20: #{nature_cnn_forward.5} parent=0 // pred_region
    %v523 = vld [vmem:[#allocation2] sm:$0xff]
    %v524 = vld [vmem:[#allocation2 + $0x8] sm:$0xff]
    %v525 = vld [vmem:[#allocation2 + $0x10] sm:$0xff]
    %v526 = vld [vmem:[#allocation2 + $0x18] sm:$0xff]
    %v527 = vld [vmem:[#allocation2 + $0x20] sm:$0xff]
    %v528 = vld [vmem:[#allocation2 + $0x28] sm:$0xff]
    %v529 = vld [vmem:[#allocation2 + $0x30] sm:$0xff]
    %v530 = vld [vmem:[#allocation2 + $0x38] sm:$0xff]
    %v531 = vld [vmem:[%s2] sm:$0xff]
    %v532 = vld [vmem:[%s2 + $0x8] sm:$0xff]
    %v533 = vld [vmem:[%s2 + $0x10] sm:$0xff]
    %v534 = vld [vmem:[%s2 + $0x18] sm:$0xff]
    %v535 = vld [vmem:[%s2 + $0x20] sm:$0xff]
    %v536 = vld [vmem:[%s2 + $0x28] sm:$0xff]
    %v537 = vld [vmem:[%s2 + $0x30] sm:$0xff]
    %v538 = vld [vmem:[%s2 + $0x38] sm:$0xff]
    %540 = vset.pattern.permute.xlu0 0
    %541 = vperm.xlu0 %540, %v531
    %v542 = vpop.permute.xlu0 %541
    %545 = vset.pattern.permute.xlu0 0
    %546 = vperm.xlu0 %545, %v532
    %v547 = vpop.permute.xlu0 %546
    %550 = vset.pattern.permute.xlu0 0
    %551 = vperm.xlu0 %550, %v533
    %v552 = vpop.permute.xlu0 %551
    %555 = vset.pattern.permute.xlu0 0
    %556 = vperm.xlu0 %555, %v534
    %v557 = vpop.permute.xlu0 %556
    %560 = vset.pattern.permute.xlu0 0
    %561 = vperm.xlu0 %560, %v535
    %v562 = vpop.permute.xlu0 %561
    %565 = vset.pattern.permute.xlu0 0
    %566 = vperm.xlu0 %565, %v536
    %v567 = vpop.permute.xlu0 %566
    %570 = vset.pattern.permute.xlu0 0
    %571 = vperm.xlu0 %570, %v537
    %v572 = vpop.permute.xlu0 %571
    %575 = vset.pattern.permute.xlu0 0
    %576 = vperm.xlu0 %575, %v538
    %v577 = vpop.permute.xlu0 %576
    %v579 = vadd.f32 %v523, %v542
    %v580 = vadd.f32 %v524, %v547
    %v581 = vadd.f32 %v525, %v552
    %v582 = vadd.f32 %v526, %v557
    %v583 = vadd.f32 %v527, %v562
    %v584 = vadd.f32 %v528, %v567
    %v585 = vadd.f32 %v529, %v572
    %v586 = vadd.f32 %v530, %v577
    %v587 = vmax.f32 %v579, 0.0
    %v588 = vmax.f32 %v580, 0.0
    %v589 = vmax.f32 %v581, 0.0
    %v590 = vmax.f32 %v582, 0.0
    %v591 = vmax.f32 %v583, 0.0
    %v592 = vmax.f32 %v584, 0.0
    %v593 = vmax.f32 %v585, 0.0
    %v594 = vmax.f32 %v586, 0.0
    %v595 = vpack.c.bf16 %v587, %v587
    %v596 = vpack.c.bf16 %v588, %v588
    %v597 = vpack.c.bf16 %v589, %v589
    %v598 = vpack.c.bf16 %v590, %v590
    %v599 = vpack.c.bf16 %v591, %v591
    %v600 = vpack.c.bf16 %v592, %v592
    %v601 = vpack.c.bf16 %v593, %v593
    %v602 = vpack.c.bf16 %v594, %v594
    %vm603 = vcmask 584704
    %604 = vst.msk [vmem:[%s3] sm:$0xf] %vm603, %v595
    %605 = vst.msk [vmem:[%s3 + $0x4] sm:$0xf] %vm603, %v596
    %606 = vst.msk [vmem:[%s3 + $0x8] sm:$0xf] %vm603, %v597
    %607 = vst.msk [vmem:[%s3 + $0xc] sm:$0xf] %vm603, %v598
    %608 = vst.msk [vmem:[%s3 + $0x10] sm:$0xf] %vm603, %v599
    %609 = vst.msk [vmem:[%s3 + $0x14] sm:$0xf] %vm603, %v600
    %610 = vst.msk [vmem:[%s3 + $0x18] sm:$0xf] %vm603, %v601
    %611 = vst.msk [vmem:[%s3 + $0x1c] sm:$0xf] %vm603, %v602
  $region21: #{nature_cnn_forward.5} parent=0 // pred_fallthru
    _
  // Predicated region
  $region22: #{nature_cnn_forward.5} parent=0 // pred_check
    _
  $region23: #{nature_cnn_forward.5} parent=0 // pred_check_branch
    %613 = sbr.rel (0) target = $region25
  $region24: #{nature_cnn_forward.5} parent=0 // pred_region
    _
  $region25: #{nature_cnn_forward.5} parent=0 // pred_fallthru
    _
  // Predicated region
  $region26: #{nature_cnn_forward.5} parent=0 // pred_check
    _
  $region27: #{nature_cnn_forward.5} parent=0 // pred_check_branch
    %615 = sbr.rel (0) target = $region29
  $region28: #{nature_cnn_forward.5} parent=0 // pred_region
    _
  $region29: #{nature_cnn_forward.5} parent=0 // pred_fallthru
    _

// kernel: nature_cnn_forward.6
$region0: #{nature_cnn_forward.6}
  #allocation0 [shape = 'u32[]', space=smem, size = 0x4, offset = 0x4, fixed_abs, tag = 'smem constant byte address 0x4 - core index']
  #allocation1 [shape = 'u32[72,128]{1,0:T(1,128)}', space=vmem, size = 0x9000, scoped, tag = 'internal scratch']
  #allocation2 [shape = 'f32[64,8]{1,0:T(8,128)}', space=vmem, size = 0x8000, scoped, tag = 'scratch operand']
  %s0 = inlined_call_operand.vmem [shape: bf16[64,576], index: 0, kind: input, shape index: {}]
  %s1 = inlined_call_operand.vmem [shape: bf16[576,8], index: 1, kind: input, shape index: {}]
  %s2 = inlined_call_operand.vmem [shape: f32[64,1], index: 2, kind: input, shape index: {}]
  %s3 = inlined_call_operand.vmem [shape: bf16[64,8], index: 3, kind: output, shape index: {}]
  %s4 = sld [smem:[#allocation0]]
  $region30: #{nature_cnn_forward.6} parent=0
    _
  %s6 = ssub.s32 1, %s4
  %s7 = scalar_select 0, %s6, %s4
  // Predicated region
  $region2: #{nature_cnn_forward.6} parent=0 // pred_check
    _
  $region3: #{nature_cnn_forward.6} parent=0 // pred_check_branch
    %9 = sbr.rel (0) target = $region5
  $region4: #{nature_cnn_forward.6} parent=0 // pred_region
    _
  $region5: #{nature_cnn_forward.6} parent=0 // pred_fallthru
    _
  // Predicated region
  $region6: #{nature_cnn_forward.6} parent=0 // pred_check
    _
  $region7: #{nature_cnn_forward.6} parent=0 // pred_check_branch
    %11 = sbr.rel (0) target = $region9
  $region8: #{nature_cnn_forward.6} parent=0 // pred_region
    _
  $region9: #{nature_cnn_forward.6} parent=0 // pred_fallthru
    _
  // Predicated region
  $region10: #{nature_cnn_forward.6} parent=0 // pred_check
    _
  $region11: #{nature_cnn_forward.6} parent=0 // pred_check_branch
    %13 = sbr.rel (0) target = $region13
  $region12: #{nature_cnn_forward.6} parent=0 // pred_region
    _
  $region13: #{nature_cnn_forward.6} parent=0 // pred_fallthru
    _
  %p15 = scmp.eq.s32.totalorder 0, 0
  // Predicated region
  $region14: #{nature_cnn_forward.6} parent=0 // pred_check
    %p16 = pneg %p15
  $region15: #{nature_cnn_forward.6} parent=0 // pred_check_branch
    %18 = sbr.rel (%p16) target = $region17
  $region16: #{nature_cnn_forward.6} parent=0 // pred_region
    %vm19 = vcmask 64512
    %20 = vst.msk [vmem:[#allocation2] sm:$0xff] %vm19, 0.0
    %21 = vst.msk [vmem:[#allocation2 + $0x8] sm:$0xff] %vm19, 0.0
    %22 = vst.msk [vmem:[#allocation2 + $0x10] sm:$0xff] %vm19, 0.0
    %23 = vst.msk [vmem:[#allocation2 + $0x18] sm:$0xff] %vm19, 0.0
    %24 = vst.msk [vmem:[#allocation2 + $0x20] sm:$0xff] %vm19, 0.0
    %25 = vst.msk [vmem:[#allocation2 + $0x28] sm:$0xff] %vm19, 0.0
    %26 = vst.msk [vmem:[#allocation2 + $0x30] sm:$0xff] %vm19, 0.0
    %27 = vst.msk [vmem:[#allocation2 + $0x38] sm:$0xff] %vm19, 0.0
  $region17: #{nature_cnn_forward.6} parent=0 // pred_fallthru
    _
  %v28 = vld [vmem:[#allocation2] sm:$0xff]
  %v29 = vld [vmem:[#allocation2 + $0x8] sm:$0xff]
  %v30 = vld [vmem:[#allocation2 + $0x10] sm:$0xff]
  %v31 = vld [vmem:[#allocation2 + $0x18] sm:$0xff]
  %v32 = vld [vmem:[#allocation2 + $0x20] sm:$0xff]
  %v33 = vld [vmem:[#allocation2 + $0x28] sm:$0xff]
  %v34 = vld [vmem:[#allocation2 + $0x30] sm:$0xff]
  %v35 = vld [vmem:[#allocation2 + $0x38] sm:$0xff]
  %v36 = vld [vmem:[%s0] sm:$0xff]
  %v37 = vld [vmem:[%s0 + $0x8] sm:$0xff]
  %v38 = vld [vmem:[%s0 + $0x10] sm:$0xf]
  %v39 = vld [vmem:[%s0 + $0x14] sm:$0xff]
  %v40 = vld [vmem:[%s0 + $0x1c] sm:$0xff]
  %v41 = vld [vmem:[%s0 + $0x24] sm:$0xf]
  %v42 = vld [vmem:[%s0 + $0x28] sm:$0xff]
  %v43 = vld [vmem:[%s0 + $0x30] sm:$0xff]
  %v44 = vld [vmem:[%s0 + $0x38] sm:$0xf]
  %v45 = vld [vmem:[%s0 + $0x3c] sm:$0xff]
  %v46 = vld [vmem:[%s0 + $0x44] sm:$0xff]
  %v47 = vld [vmem:[%s0 + $0x4c] sm:$0xf]
  %v48 = vld [vmem:[%s0 + $0x50] sm:$0xff]
  %v49 = vld [vmem:[%s0 + $0x58] sm:$0xff]
  %v50 = vld [vmem:[%s0 + $0x60] sm:$0xf]
  %v51 = vld [vmem:[%s0 + $0x64] sm:$0xff]
  %v52 = vld [vmem:[%s0 + $0x6c] sm:$0xff]
  %v53 = vld [vmem:[%s0 + $0x74] sm:$0xf]
  %v54 = vld [vmem:[%s0 + $0x78] sm:$0xff]
  %v55 = vld [vmem:[%s0 + $0x80] sm:$0xff]
  %v56 = vld [vmem:[%s0 + $0x88] sm:$0xf]
  %v57 = vld [vmem:[%s0 + $0x8c] sm:$0xff]
  %v58 = vld [vmem:[%s0 + $0x94] sm:$0xff]
  %v59 = vld [vmem:[%s0 + $0x9c] sm:$0xf]
  %v60 = vld [vmem:[%s1] sm:$0xf]
  %v61 = vld [vmem:[%s1 + $0x4] sm:$0xf]
  %v62 = vld [vmem:[%s1 + $0x8] sm:$0xf]
  %v63 = vld [vmem:[%s1 + $0xc] sm:$0xf]
  %v64 = vld [vmem:[%s1 + $0x10] sm:$0xf]
  %v65 = vld [vmem:[%s1 + $0x14] sm:$0xf]
  %v66 = vld [vmem:[%s1 + $0x18] sm:$0xf]
  %v67 = vld [vmem:[%s1 + $0x1c] sm:$0xf]
  %v68 = vld [vmem:[%s1 + $0x20] sm:$0xf]
  %v69 = vld [vmem:[%s1 + $0x24] sm:$0xf]
  %v70 = vld [vmem:[%s1 + $0x28] sm:$0xf]
  %v71 = vld [vmem:[%s1 + $0x2c] sm:$0xf]
  %v72 = vld [vmem:[%s1 + $0x30] sm:$0xf]
  %v73 = vld [vmem:[%s1 + $0x34] sm:$0xf]
  %v74 = vld [vmem:[%s1 + $0x38] sm:$0xf]
  %v75 = vld [vmem:[%s1 + $0x3c] sm:$0xf]
  %v76 = vld [vmem:[%s1 + $0x40] sm:$0xf]
  %v77 = vld [vmem:[%s1 + $0x44] sm:$0xf]
  %v78 = vld [vmem:[%s1 + $0x48] sm:$0xf]
  %v79 = vld [vmem:[%s1 + $0x4c] sm:$0xf]
  %v80 = vld [vmem:[%s1 + $0x50] sm:$0xf]
  %v81 = vld [vmem:[%s1 + $0x54] sm:$0xf]
  %v82 = vld [vmem:[%s1 + $0x58] sm:$0xf]
  %v83 = vld [vmem:[%s1 + $0x5c] sm:$0xf]
  %v84 = vld [vmem:[%s1 + $0x60] sm:$0xf]
  %v85 = vld [vmem:[%s1 + $0x64] sm:$0xf]
  %v86 = vld [vmem:[%s1 + $0x68] sm:$0xf]
  %v87 = vld [vmem:[%s1 + $0x6c] sm:$0xf]
  %v88 = vld [vmem:[%s1 + $0x70] sm:$0xf]
  %v89 = vld [vmem:[%s1 + $0x74] sm:$0xf]
  %v90 = vld [vmem:[%s1 + $0x78] sm:$0xf]
  %v91 = vld [vmem:[%s1 + $0x7c] sm:$0xf]
  %v92 = vld [vmem:[%s1 + $0x80] sm:$0xf]
  %v93 = vld [vmem:[%s1 + $0x84] sm:$0xf]
  %v94 = vld [vmem:[%s1 + $0x88] sm:$0xf]
  %v95 = vld [vmem:[%s1 + $0x8c] sm:$0xf]
  %v96 = vld [vmem:[%s1 + $0x90] sm:$0xf]
  %v97 = vld [vmem:[%s1 + $0x94] sm:$0xf]
  %v98 = vld [vmem:[%s1 + $0x98] sm:$0xf]
  %v99 = vld [vmem:[%s1 + $0x9c] sm:$0xf]
  %v100 = vld [vmem:[%s1 + $0xa0] sm:$0xf]
  %v101 = vld [vmem:[%s1 + $0xa4] sm:$0xf]
  %v102 = vld [vmem:[%s1 + $0xa8] sm:$0xf]
  %v103 = vld [vmem:[%s1 + $0xac] sm:$0xf]
  %v104 = vld [vmem:[%s1 + $0xb0] sm:$0xf]
  %v105 = vld [vmem:[%s1 + $0xb4] sm:$0xf]
  %v106 = vld [vmem:[%s1 + $0xb8] sm:$0xf]
  %v107 = vld [vmem:[%s1 + $0xbc] sm:$0xf]
  %v108 = vld [vmem:[%s1 + $0xc0] sm:$0xf]
  %v109 = vld [vmem:[%s1 + $0xc4] sm:$0xf]
  %v110 = vld [vmem:[%s1 + $0xc8] sm:$0xf]
  %v111 = vld [vmem:[%s1 + $0xcc] sm:$0xf]
  %v112 = vld [vmem:[%s1 + $0xd0] sm:$0xf]
  %v113 = vld [vmem:[%s1 + $0xd4] sm:$0xf]
  %v114 = vld [vmem:[%s1 + $0xd8] sm:$0xf]
  %v115 = vld [vmem:[%s1 + $0xdc] sm:$0xf]
  %v116 = vld [vmem:[%s1 + $0xe0] sm:$0xf]
  %v117 = vld [vmem:[%s1 + $0xe4] sm:$0xf]
  %v118 = vld [vmem:[%s1 + $0xe8] sm:$0xf]
  %v119 = vld [vmem:[%s1 + $0xec] sm:$0xf]
  %v120 = vld [vmem:[%s1 + $0xf0] sm:$0xf]
  %v121 = vld [vmem:[%s1 + $0xf4] sm:$0xf]
  %v122 = vld [vmem:[%s1 + $0xf8] sm:$0xf]
  %v123 = vld [vmem:[%s1 + $0xfc] sm:$0xf]
  %v124 = vld [vmem:[%s1 + $0x100] sm:$0xf]
  %v125 = vld [vmem:[%s1 + $0x104] sm:$0xf]
  %v126 = vld [vmem:[%s1 + $0x108] sm:$0xf]
  %v127 = vld [vmem:[%s1 + $0x10c] sm:$0xf]
  %v128 = vld [vmem:[%s1 + $0x110] sm:$0xf]
  %v129 = vld [vmem:[%s1 + $0x114] sm:$0xf]
  %v130 = vld [vmem:[%s1 + $0x118] sm:$0xf]
  %v131 = vld [vmem:[%s1 + $0x11c] sm:$0xf]
  %v156 = vunpack.c.l.b16 %v36
  %v157 = vunpack.c.h.b16 %v36
  %v158 = vunpack.c.l.b16 %v37
  %v159 = vunpack.c.h.b16 %v37
  %v160 = vunpack.c.l.b16 %v38
  %v161 = vunpack.c.l.b16 %v39
  %v162 = vunpack.c.h.b16 %v39
  %v163 = vunpack.c.l.b16 %v40
  %v164 = vunpack.c.h.b16 %v40
  %v165 = vunpack.c.l.b16 %v41
  %v166 = vunpack.c.l.b16 %v42
  %v167 = vunpack.c.h.b16 %v42
  %v168 = vunpack.c.l.b16 %v43
  %v169 = vunpack.c.h.b16 %v43
  %v170 = vunpack.c.l.b16 %v44
  %v171 = vunpack.c.l.b16 %v45
  %v172 = vunpack.c.h.b16 %v45
  %v173 = vunpack.c.l.b16 %v46
  %v174 = vunpack.c.h.b16 %v46
  %v175 = vunpack.c.l.b16 %v47
  %v176 = vunpack.c.l.b16 %v48
  %v177 = vunpack.c.h.b16 %v48
  %v178 = vunpack.c.l.b16 %v49
  %v179 = vunpack.c.h.b16 %v49
  %v180 = vunpack.c.l.b16 %v50
  %v181 = vunpack.c.l.b16 %v51
  %v182 = vunpack.c.h.b16 %v51
  %v183 = vunpack.c.l.b16 %v52
  %v184 = vunpack.c.h.b16 %v52
  %v185 = vunpack.c.l.b16 %v53
  %v186 = vunpack.c.l.b16 %v54
  %v187 = vunpack.c.h.b16 %v54
  %v188 = vunpack.c.l.b16 %v55
  %v189 = vunpack.c.h.b16 %v55
  %v190 = vunpack.c.l.b16 %v56
  %v191 = vunpack.c.l.b16 %v57
  %v192 = vunpack.c.h.b16 %v57
  %v193 = vunpack.c.l.b16 %v58
  %v194 = vunpack.c.h.b16 %v58
  %v195 = vunpack.c.l.b16 %v59
  %v196 = vpack.c.b16 %v161, %v156
  %v197 = vpack.c.b16 %v162, %v157
  %v198 = vpack.c.b16 %v163, %v158
  %v199 = vpack.c.b16 %v164, %v159
  %v200 = vpack.c.b16 %v165, %v160
  %v201 = vpack.c.b16 %v171, %v166
  %v202 = vpack.c.b16 %v172, %v167
  %v203 = vpack.c.b16 %v173, %v168
  %v204 = vpack.c.b16 %v174, %v169
  %v205 = vpack.c.b16 %v175, %v170
  %v206 = vpack.c.b16 %v181, %v176
  %v207 = vpack.c.b16 %v182, %v177
  %v208 = vpack.c.b16 %v183, %v178
  %v209 = vpack.c.b16 %v184, %v179
  %v210 = vpack.c.b16 %v185, %v180
  %v211 = vpack.c.b16 %v191, %v186
  %v212 = vpack.c.b16 %v192, %v187
  %v213 = vpack.c.b16 %v193, %v188
  %v214 = vpack.c.b16 %v194, %v189
  %v215 = vpack.c.b16 %v195, %v190
  %v304 = vunpack.c.l.b16 %v60
  %v305 = vunpack.c.l.b16 %v61
  %v306 = vunpack.c.l.b16 %v62
  %v307 = vunpack.c.l.b16 %v63
  %v308 = vunpack.c.l.b16 %v64
  %v309 = vunpack.c.l.b16 %v65
  %v310 = vunpack.c.l.b16 %v66
  %v311 = vunpack.c.l.b16 %v67
  %v312 = vunpack.c.l.b16 %v68
  %v313 = vunpack.c.l.b16 %v69
  %v314 = vunpack.c.l.b16 %v70
  %v315 = vunpack.c.l.b16 %v71
  %v316 = vunpack.c.l.b16 %v72
  %v317 = vunpack.c.l.b16 %v73
  %v318 = vunpack.c.l.b16 %v74
  %v319 = vunpack.c.l.b16 %v75
  %v320 = vunpack.c.l.b16 %v76
  %v321 = vunpack.c.l.b16 %v77
  %v322 = vunpack.c.l.b16 %v78
  %v323 = vunpack.c.l.b16 %v79
  %v324 = vunpack.c.l.b16 %v80
  %v325 = vunpack.c.l.b16 %v81
  %v326 = vunpack.c.l.b16 %v82
  %v327 = vunpack.c.l.b16 %v83
  %v328 = vunpack.c.l.b16 %v84
  %v329 = vunpack.c.l.b16 %v85
  %v330 = vunpack.c.l.b16 %v86
  %v331 = vunpack.c.l.b16 %v87
  %v332 = vunpack.c.l.b16 %v88
  %v333 = vunpack.c.l.b16 %v89
  %v334 = vunpack.c.l.b16 %v90
  %v335 = vunpack.c.l.b16 %v91
  %v336 = vunpack.c.l.b16 %v92
  %v337 = vunpack.c.l.b16 %v93
  %v338 = vunpack.c.l.b16 %v94
  %v339 = vunpack.c.l.b16 %v95
  %v340 = vunpack.c.l.b16 %v96
  %v341 = vunpack.c.l.b16 %v97
  %v342 = vunpack.c.l.b16 %v98
  %v343 = vunpack.c.l.b16 %v99
  %v344 = vunpack.c.l.b16 %v100
  %v345 = vunpack.c.l.b16 %v101
  %v346 = vunpack.c.l.b16 %v102
  %v347 = vunpack.c.l.b16 %v103
  %v348 = vunpack.c.l.b16 %v104
  %v349 = vunpack.c.l.b16 %v105
  %v350 = vunpack.c.l.b16 %v106
  %v351 = vunpack.c.l.b16 %v107
  %v352 = vunpack.c.l.b16 %v108
  %v353 = vunpack.c.l.b16 %v109
  %v354 = vunpack.c.l.b16 %v110
  %v355 = vunpack.c.l.b16 %v111
  %v356 = vunpack.c.l.b16 %v112
  %v357 = vunpack.c.l.b16 %v113
  %v358 = vunpack.c.l.b16 %v114
  %v359 = vunpack.c.l.b16 %v115
  %v360 = vunpack.c.l.b16 %v116
  %v361 = vunpack.c.l.b16 %v117
  %v362 = vunpack.c.l.b16 %v118
  %v363 = vunpack.c.l.b16 %v119
  %v364 = vunpack.c.l.b16 %v120
  %v365 = vunpack.c.l.b16 %v121
  %v366 = vunpack.c.l.b16 %v122
  %v367 = vunpack.c.l.b16 %v123
  %v368 = vunpack.c.l.b16 %v124
  %v369 = vunpack.c.l.b16 %v125
  %v370 = vunpack.c.l.b16 %v126
  %v371 = vunpack.c.l.b16 %v127
  %v372 = vunpack.c.l.b16 %v128
  %v373 = vunpack.c.l.b16 %v129
  %v374 = vunpack.c.l.b16 %v130
  %v375 = vunpack.c.l.b16 %v131
  %v376 = vpack.c.b16 %v305, %v304
  %v377 = vpack.c.b16 %v307, %v306
  %v378 = vpack.c.b16 %v309, %v308
  %v379 = vpack.c.b16 %v311, %v310
  %v380 = vpack.c.b16 %v313, %v312
  %v381 = vpack.c.b16 %v315, %v314
  %v382 = vpack.c.b16 %v317, %v316
  %v383 = vpack.c.b16 %v319, %v318
  %v384 = vpack.c.b16 %v321, %v320
  %v385 = vpack.c.b16 %v323, %v322
  %v386 = vpack.c.b16 %v325, %v324
  %v387 = vpack.c.b16 %v327, %v326
  %v388 = vpack.c.b16 %v329, %v328
  %v389 = vpack.c.b16 %v331, %v330
  %v390 = vpack.c.b16 %v333, %v332
  %v391 = vpack.c.b16 %v335, %v334
  %v392 = vpack.c.b16 %v337, %v336
  %v393 = vpack.c.b16 %v339, %v338
  %v394 = vpack.c.b16 %v341, %v340
  %v395 = vpack.c.b16 %v343, %v342
  %v396 = vpack.c.b16 %v345, %v344
  %v397 = vpack.c.b16 %v347, %v346
  %v398 = vpack.c.b16 %v349, %v348
  %v399 = vpack.c.b16 %v351, %v350
  %v400 = vpack.c.b16 %v353, %v352
  %v401 = vpack.c.b16 %v355, %v354
  %v402 = vpack.c.b16 %v357, %v356
  %v403 = vpack.c.b16 %v359, %v358
  %v404 = vpack.c.b16 %v361, %v360
  %v405 = vpack.c.b16 %v363, %v362
  %v406 = vpack.c.b16 %v365, %v364
  %v407 = vpack.c.b16 %v367, %v366
  %v408 = vpack.c.b16 %v369, %v368
  %v409 = vpack.c.b16 %v371, %v370
  %v410 = vpack.c.b16 %v373, %v372
  %v411 = vpack.c.b16 %v375, %v374
  %vm448 = vcmask 523264
  %v450 = vsel %vm448, %v200, 0
  %v453 = vsel %vm448, %v205, 0
  %v456 = vsel %vm448, %v210, 0
  %v459 = vsel %vm448, %v215, 0
  %461 = vmatpush.bf16.msra.mxu0 %v383
  %462 = vmatpush.bf16.msra.mxu0 %v382
  %463 = vmatpush.bf16.msra.mxu0 %v381
  %464 = vmatpush.bf16.msra.mxu0 %v380
  %465 = vmatpush.bf16.msra.mxu0 %v379
  %466 = vmatpush.bf16.msra.mxu0 %v378
  %467 = vmatpush.bf16.msra.mxu0 %v377
  %468 = vmatpush.bf16.msra.mxu0 %v376
  %469 = vmatmul.bf16.gmra.mxu0 %v196
  %v470 = vpop.f32.mrf.mxu0
  %v471 = vadd.f32 0.0, %v470
  %v472 = vpop.f32.mrf.mxu0
  %v473 = vadd.f32 0.0, %v472
  %474 = vmatmul.bf16.gmra.mxu0 %v201
  %v475 = vpop.f32.mrf.mxu0
  %v476 = vadd.f32 0.0, %v475
  %v477 = vpop.f32.mrf.mxu0
  %v478 = vadd.f32 0.0, %v477
  %479 = vmatmul.bf16.gmra.mxu0 %v206
  %v480 = vpop.f32.mrf.mxu0
  %v481 = vadd.f32 0.0, %v480
  %v482 = vpop.f32.mrf.mxu0
  %v483 = vadd.f32 0.0, %v482
  %484 = vmatmul.bf16.gmra.mxu0 %v211
  %v485 = vpop.f32.mrf.mxu0
  %v486 = vadd.f32 0.0, %v485
  %v487 = vpop.f32.mrf.mxu0
  %v488 = vadd.f32 0.0, %v487
  %489 = vdwg.mxu0
  %490 = vmatpush.bf16.msra.mxu0 %v391
  %491 = vmatpush.bf16.msra.mxu0 %v390
  %492 = vmatpush.bf16.msra.mxu0 %v389
  %493 = vmatpush.bf16.msra.mxu0 %v388
  %494 = vmatpush.bf16.msra.mxu0 %v387
  %495 = vmatpush.bf16.msra.mxu0 %v386
  %496 = vmatpush.bf16.msra.mxu0 %v385
  %497 = vmatpush.bf16.msra.mxu0 %v384
  %498 = vmatmul.bf16.gmra.mxu0 %v197
  %v499 = vpop.f32.mrf.mxu0
  %v500 = vadd.f32 %v471, %v499
  %v501 = vpop.f32.mrf.mxu0
  %v502 = vadd.f32 %v473, %v501
  %503 = vmatmul.bf16.gmra.mxu0 %v202
  %v504 = vpop.f32.mrf.mxu0
  %v505 = vadd.f32 %v476, %v504
  %v506 = vpop.f32.mrf.mxu0
  %v507 = vadd.f32 %v478, %v506
  %508 = vmatmul.bf16.gmra.mxu0 %v207
  %v509 = vpop.f32.mrf.mxu0
  %v510 = vadd.f32 %v481, %v509
  %v511 = vpop.f32.mrf.mxu0
  %v512 = vadd.f32 %v483, %v511
  %513 = vmatmul.bf16.gmra.mxu0 %v212
  %v514 = vpop.f32.mrf.mxu0
  %v515 = vadd.f32 %v486, %v514
  %v516 = vpop.f32.mrf.mxu0
  %v517 = vadd.f32 %v488, %v516
  %518 = vdwg.mxu0
  %519 = vmatpush.bf16.msra.mxu0 %v399
  %520 = vmatpush.bf16.msra.mxu0 %v398
  %521 = vmatpush.bf16.msra.mxu0 %v397
  %522 = vmatpush.bf16.msra.mxu0 %v396
  %523 = vmatpush.bf16.msra.mxu0 %v395
  %524 = vmatpush.bf16.msra.mxu0 %v394
  %525 = vmatpush.bf16.msra.mxu0 %v393
  %526 = vmatpush.bf16.msra.mxu0 %v392
  %527 = vmatmul.bf16.gmra.mxu0 %v198
  %v528 = vpop.f32.mrf.mxu0
  %v529 = vadd.f32 %v500, %v528
  %v530 = vpop.f32.mrf.mxu0
  %v531 = vadd.f32 %v502, %v530
  %532 = vmatmul.bf16.gmra.mxu0 %v203
  %v533 = vpop.f32.mrf.mxu0
  %v534 = vadd.f32 %v505, %v533
  %v535 = vpop.f32.mrf.mxu0
  %v536 = vadd.f32 %v507, %v535
  %537 = vmatmul.bf16.gmra.mxu0 %v208
  %v538 = vpop.f32.mrf.mxu0
  %v539 = vadd.f32 %v510, %v538
  %v540 = vpop.f32.mrf.mxu0
  %v541 = vadd.f32 %v512, %v540
  %542 = vmatmul.bf16.gmra.mxu0 %v213
  %v543 = vpop.f32.mrf.mxu0
  %v544 = vadd.f32 %v515, %v543
  %v545 = vpop.f32.mrf.mxu0
  %v546 = vadd.f32 %v517, %v545
  %547 = vdwg.mxu0
  %548 = vmatpush.bf16.msra.mxu0 %v407
  %549 = vmatpush.bf16.msra.mxu0 %v406
  %550 = vmatpush.bf16.msra.mxu0 %v405
  %551 = vmatpush.bf16.msra.mxu0 %v404
  %552 = vmatpush.bf16.msra.mxu0 %v403
  %553 = vmatpush.bf16.msra.mxu0 %v402
  %554 = vmatpush.bf16.msra.mxu0 %v401
  %555 = vmatpush.bf16.msra.mxu0 %v400
  %556 = vmatmul.bf16.gmra.mxu0 %v199
  %v557 = vpop.f32.mrf.mxu0
  %v558 = vadd.f32 %v529, %v557
  %v559 = vpop.f32.mrf.mxu0
  %v560 = vadd.f32 %v531, %v559
  %561 = vmatmul.bf16.gmra.mxu0 %v204
  %v562 = vpop.f32.mrf.mxu0
  %v563 = vadd.f32 %v534, %v562
  %v564 = vpop.f32.mrf.mxu0
  %v565 = vadd.f32 %v536, %v564
  %566 = vmatmul.bf16.gmra.mxu0 %v209
  %v567 = vpop.f32.mrf.mxu0
  %v568 = vadd.f32 %v539, %v567
  %v569 = vpop.f32.mrf.mxu0
  %v570 = vadd.f32 %v541, %v569
  %571 = vmatmul.bf16.gmra.mxu0 %v214
  %v572 = vpop.f32.mrf.mxu0
  %v573 = vadd.f32 %v544, %v572
  %v574 = vpop.f32.mrf.mxu0
  %v575 = vadd.f32 %v546, %v574
  %576 = vdwg.mxu0
  %577 = vmatpush.bf16.msra.mxu0 0
  %578 = vmatpush.bf16.msra.mxu0 0
  %579 = vmatpush.bf16.msra.mxu0 0
  %580 = vmatpush.bf16.msra.mxu0 0
  %581 = vmatpush.bf16.msra.mxu0 %v411
  %582 = vmatpush.bf16.msra.mxu0 %v410
  %583 = vmatpush.bf16.msra.mxu0 %v409
  %584 = vmatpush.bf16.msra.mxu0 %v408
  %585 = vmatmul.bf16.gmra.mxu0 %v450
  %v586 = vpop.f32.mrf.mxu0
  %v587 = vadd.f32 %v558, %v586
  %v588 = vpop.f32.mrf.mxu0
  %v589 = vadd.f32 %v560, %v588
  %590 = vmatmul.bf16.gmra.mxu0 %v453
  %v591 = vpop.f32.mrf.mxu0
  %v592 = vadd.f32 %v563, %v591
  %v593 = vpop.f32.mrf.mxu0
  %v594 = vadd.f32 %v565, %v593
  %595 = vmatmul.bf16.gmra.mxu0 %v456
  %v596 = vpop.f32.mrf.mxu0
  %v597 = vadd.f32 %v568, %v596
  %v598 = vpop.f32.mrf.mxu0
  %v599 = vadd.f32 %v570, %v598
  %600 = vmatmul.bf16.gmra.mxu0 %v459
  %v601 = vpop.f32.mrf.mxu0
  %v602 = vadd.f32 %v573, %v601
  %v603 = vpop.f32.mrf.mxu0
  %v604 = vadd.f32 %v575, %v603
  %605 = vdwg.mxu0
  %v606 = vadd.f32 %v28, %v587
  %v607 = vadd.f32 %v29, %v589
  %v608 = vadd.f32 %v30, %v592
  %v609 = vadd.f32 %v31, %v594
  %v610 = vadd.f32 %v32, %v597
  %v611 = vadd.f32 %v33, %v599
  %v612 = vadd.f32 %v34, %v602
  %v613 = vadd.f32 %v35, %v604
  %vm614 = vcmask 64512
  %615 = vst.msk [vmem:[#allocation2] sm:$0xff] %vm614, %v606
  %616 = vst.msk [vmem:[#allocation2 + $0x8] sm:$0xff] %vm614, %v607
  %617 = vst.msk [vmem:[#allocation2 + $0x10] sm:$0xff] %vm614, %v608
  %618 = vst.msk [vmem:[#allocation2 + $0x18] sm:$0xff] %vm614, %v609
  %619 = vst.msk [vmem:[#allocation2 + $0x20] sm:$0xff] %vm614, %v610
  %620 = vst.msk [vmem:[#allocation2 + $0x28] sm:$0xff] %vm614, %v611
  %621 = vst.msk [vmem:[#allocation2 + $0x30] sm:$0xff] %vm614, %v612
  %622 = vst.msk [vmem:[#allocation2 + $0x38] sm:$0xff] %vm614, %v613
  // Predicated region
  $region18: #{nature_cnn_forward.6} parent=0 // pred_check
    %p623 = pneg %p15
  $region19: #{nature_cnn_forward.6} parent=0 // pred_check_branch
    %625 = sbr.rel (%p623) target = $region21
  $region20: #{nature_cnn_forward.6} parent=0 // pred_region
    %v626 = vld [vmem:[#allocation2] sm:$0xff]
    %v627 = vld [vmem:[#allocation2 + $0x8] sm:$0xff]
    %v628 = vld [vmem:[#allocation2 + $0x10] sm:$0xff]
    %v629 = vld [vmem:[#allocation2 + $0x18] sm:$0xff]
    %v630 = vld [vmem:[#allocation2 + $0x20] sm:$0xff]
    %v631 = vld [vmem:[#allocation2 + $0x28] sm:$0xff]
    %v632 = vld [vmem:[#allocation2 + $0x30] sm:$0xff]
    %v633 = vld [vmem:[#allocation2 + $0x38] sm:$0xff]
    %v634 = vld [vmem:[%s2] sm:$0xff]
    %v635 = vld [vmem:[%s2 + $0x8] sm:$0xff]
    %v636 = vld [vmem:[%s2 + $0x10] sm:$0xff]
    %v637 = vld [vmem:[%s2 + $0x18] sm:$0xff]
    %v638 = vld [vmem:[%s2 + $0x20] sm:$0xff]
    %v639 = vld [vmem:[%s2 + $0x28] sm:$0xff]
    %v640 = vld [vmem:[%s2 + $0x30] sm:$0xff]
    %v641 = vld [vmem:[%s2 + $0x38] sm:$0xff]
    %643 = vset.pattern.permute.xlu0 0
    %644 = vperm.xlu0 %643, %v634
    %v645 = vpop.permute.xlu0 %644
    %648 = vset.pattern.permute.xlu0 0
    %649 = vperm.xlu0 %648, %v635
    %v650 = vpop.permute.xlu0 %649
    %653 = vset.pattern.permute.xlu0 0
    %654 = vperm.xlu0 %653, %v636
    %v655 = vpop.permute.xlu0 %654
    %658 = vset.pattern.permute.xlu0 0
    %659 = vperm.xlu0 %658, %v637
    %v660 = vpop.permute.xlu0 %659
    %663 = vset.pattern.permute.xlu0 0
    %664 = vperm.xlu0 %663, %v638
    %v665 = vpop.permute.xlu0 %664
    %668 = vset.pattern.permute.xlu0 0
    %669 = vperm.xlu0 %668, %v639
    %v670 = vpop.permute.xlu0 %669
    %673 = vset.pattern.permute.xlu0 0
    %674 = vperm.xlu0 %673, %v640
    %v675 = vpop.permute.xlu0 %674
    %678 = vset.pattern.permute.xlu0 0
    %679 = vperm.xlu0 %678, %v641
    %v680 = vpop.permute.xlu0 %679
    %v682 = vadd.f32 %v626, %v645
    %v683 = vadd.f32 %v627, %v650
    %v684 = vadd.f32 %v628, %v655
    %v685 = vadd.f32 %v629, %v660
    %v686 = vadd.f32 %v630, %v665
    %v687 = vadd.f32 %v631, %v670
    %v688 = vadd.f32 %v632, %v675
    %v689 = vadd.f32 %v633, %v680
    %v690 = vmax.f32 %v682, 0.0
    %v691 = vmax.f32 %v683, 0.0
    %v692 = vmax.f32 %v684, 0.0
    %v693 = vmax.f32 %v685, 0.0
    %v694 = vmax.f32 %v686, 0.0
    %v695 = vmax.f32 %v687, 0.0
    %v696 = vmax.f32 %v688, 0.0
    %v697 = vmax.f32 %v689, 0.0
    %v698 = vpack.c.bf16 %v690, %v690
    %v699 = vpack.c.bf16 %v691, %v691
    %v700 = vpack.c.bf16 %v692, %v692
    %v701 = vpack.c.bf16 %v693, %v693
    %v702 = vpack.c.bf16 %v694, %v694
    %v703 = vpack.c.bf16 %v695, %v695
    %v704 = vpack.c.bf16 %v696, %v696
    %v705 = vpack.c.bf16 %v697, %v697
    %vm706 = vcmask 60416
    %707 = vst.msk [vmem:[%s3] sm:$0xf] %vm706, %v698
    %708 = vst.msk [vmem:[%s3 + $0x4] sm:$0xf] %vm706, %v699
    %709 = vst.msk [vmem:[%s3 + $0x8] sm:$0xf] %vm706, %v700
    %710 = vst.msk [vmem:[%s3 + $0xc] sm:$0xf] %vm706, %v701
    %711 = vst.msk [vmem:[%s3 + $0x10] sm:$0xf] %vm706, %v702
    %712 = vst.msk [vmem:[%s3 + $0x14] sm:$0xf] %vm706, %v703
    %713 = vst.msk [vmem:[%s3 + $0x18] sm:$0xf] %vm706, %v704
    %714 = vst.msk [vmem:[%s3 + $0x1c] sm:$0xf] %vm706, %v705
  $region21: #{nature_cnn_forward.6} parent=0 // pred_fallthru
    _
  // Predicated region
  $region22: #{nature_cnn_forward.6} parent=0 // pred_check
    _
  $region23: #{nature_cnn_forward.6} parent=0 // pred_check_branch
    %716 = sbr.rel (0) target = $region25
  $region24: #{nature_cnn_forward.6} parent=0 // pred_region
    _
  $region25: #{nature_cnn_forward.6} parent=0 // pred_fallthru
    _
  // Predicated region
  $region26: #{nature_cnn_forward.6} parent=0 // pred_check
    _
  $region27: #{nature_cnn_forward.6} parent=0 // pred_check_branch
    %718 = sbr.rel (0) target = $region29
  $region28: #{nature_cnn_forward.6} parent=0 // pred_region
    _
  $region29: #{nature_cnn_forward.6} parent=0 // pred_fallthru
    _

// kernel: nature_cnn_forward.7
$region0: #{nature_cnn_forward.7}
  #allocation0 [shape = 'u32[]', space=smem, size = 0x4, offset = 0x4, fixed_abs, tag = 'smem constant byte address 0x4 - core index']
  #allocation1 [shape = 'u32[72,128]{1,0:T(1,128)}', space=vmem, size = 0x9000, scoped, tag = 'internal scratch']
  #allocation2 [shape = 'f32[8,512]{1,0:T(8,128)}', space=vmem, size = 0x4000, scoped, tag = 'scratch operand']
  %s0 = inlined_call_operand.vmem [shape: bf16[8,128], index: 0, kind: input, shape index: {}]
  %s1 = inlined_call_operand.vmem [shape: bf16[128,512], index: 1, kind: input, shape index: {}]
  %s2 = inlined_call_operand.vmem [shape: f32[1,512], index: 2, kind: input, shape index: {}]
  %s3 = inlined_call_operand.vmem [shape: bf16[512,128], index: 3, kind: input, shape index: {}]
  %s4 = inlined_call_operand.vmem [shape: f32[1,128], index: 4, kind: input, shape index: {}]
  %s5 = inlined_call_operand.hbm [shape: f32[8,128], index: 5, kind: output, shape index: {}]
  %s6 = sld [smem:[#allocation0]]
  $region38: #{nature_cnn_forward.7} parent=0
    _
  %s8 = ssub.s32 1, %s6
  %s9 = scalar_select 0, %s8, %s6
  $region1: #{nature_cnn_forward.7} parent=0
    #allocation3 [shape = 'u8[4096]{0}', space=vmem, size = 0x1000, scoped, tag = 'output window, operand 0, single buffered']
    #allocation4 [shape = 's32[1]{0}', space=sflag, size = 0x4, scoped, tag = 'scoped memory for nature_cnn_forward.7']
    %10 = vsyncpa [#allocation4], 0
    // Predicated region
    $region2: #{nature_cnn_forward.7} parent=1 // pred_check
      _
    $region3: #{nature_cnn_forward.7} parent=1 // pred_check_branch
      %12 = sbr.rel (0) target = $region5
    $region4: #{nature_cnn_forward.7} parent=1 // pred_region
      _
    $region5: #{nature_cnn_forward.7} parent=1 // pred_fallthru
      _
    // Predicated region
    $region6: #{nature_cnn_forward.7} parent=1 // pred_check
      _
    $region7: #{nature_cnn_forward.7} parent=1 // pred_check_branch
      %14 = sbr.rel (0) target = $region9
    $region8: #{nature_cnn_forward.7} parent=1 // pred_region
      _
    $region9: #{nature_cnn_forward.7} parent=1 // pred_fallthru
      _
    // Predicated region
    $region10: #{nature_cnn_forward.7} parent=1 // pred_check
      _
    $region11: #{nature_cnn_forward.7} parent=1 // pred_check_branch
      %16 = sbr.rel (0) target = $region13
    $region12: #{nature_cnn_forward.7} parent=1 // pred_region
      _
    $region13: #{nature_cnn_forward.7} parent=1 // pred_fallthru
      _
    // Predicated region
    $region14: #{nature_cnn_forward.7} parent=1 // pred_check
      _
    $region15: #{nature_cnn_forward.7} parent=1 // pred_check_branch
      %18 = sbr.rel (0) target = $region17
    $region16: #{nature_cnn_forward.7} parent=1 // pred_region
      _
    $region17: #{nature_cnn_forward.7} parent=1 // pred_fallthru
      _
    // Predicated region
    $region18: #{nature_cnn_forward.7} parent=1 // pred_check
      _
    $region19: #{nature_cnn_forward.7} parent=1 // pred_check_branch
      %20 = sbr.rel (0) target = $region21
    $region20: #{nature_cnn_forward.7} parent=1 // pred_region
      _
    $region21: #{nature_cnn_forward.7} parent=1 // pred_fallthru
      _
    %p21 = scmp.eq.s32.totalorder 0, 0
    // Predicated region
    $region22: #{nature_cnn_forward.7} parent=1 // pred_check
      %p22 = pneg %p21
    $region23: #{nature_cnn_forward.7} parent=1 // pred_check_branch
      %24 = sbr.rel (%p22) target = $region25
    $region24: #{nature_cnn_forward.7} parent=1 // pred_region
      %25 = vst [vmem:[#allocation2] sm:$0xff] 0.0
      %26 = vst [vmem:[#allocation2 + $0x8] sm:$0xff] 0.0
      %27 = vst [vmem:[#allocation2 + $0x10] sm:$0xff] 0.0
      %28 = vst [vmem:[#allocation2 + $0x18] sm:$0xff] 0.0
    $region25: #{nature_cnn_forward.7} parent=1 // pred_fallthru
      _
    %v29 = vld [vmem:[#allocation2] sm:$0xff]
    %v30 = vld [vmem:[#allocation2 + $0x8] sm:$0xff]
    %v31 = vld [vmem:[#allocation2 + $0x10] sm:$0xff]
    %v32 = vld [vmem:[#allocation2 + $0x18] sm:$0xff]
    %v33 = vld [vmem:[%s0] sm:$0xf]
    %v34 = vld [vmem:[%s1] sm:$0xff]
    %v35 = vld [vmem:[%s1 + $0x8] sm:$0xff]
    %v36 = vld [vmem:[%s1 + $0x10] sm:$0xff]
    %v37 = vld [vmem:[%s1 + $0x18] sm:$0xff]
    %v38 = vld [vmem:[%s1 + $0x20] sm:$0xff]
    %v39 = vld [vmem:[%s1 + $0x28] sm:$0xff]
    %v40 = vld [vmem:[%s1 + $0x30] sm:$0xff]
    %v41 = vld [vmem:[%s1 + $0x38] sm:$0xff]
    %v42 = vld [vmem:[%s1 + $0x40] sm:$0xff]
    %v43 = vld [vmem:[%s1 + $0x48] sm:$0xff]
    %v44 = vld [vmem:[%s1 + $0x50] sm:$0xff]
    %v45 = vld [vmem:[%s1 + $0x58] sm:$0xff]
    %v46 = vld [vmem:[%s1 + $0x60] sm:$0xff]
    %v47 = vld [vmem:[%s1 + $0x68] sm:$0xff]
    %v48 = vld [vmem:[%s1 + $0x70] sm:$0xff]
    %v49 = vld [vmem:[%s1 + $0x78] sm:$0xff]
    %v50 = vld [vmem:[%s1 + $0x80] sm:$0xff]
    %v51 = vld [vmem:[%s1 + $0x88] sm:$0xff]
    %v52 = vld [vmem:[%s1 + $0x90] sm:$0xff]
    %v53 = vld [vmem:[%s1 + $0x98] sm:$0xff]
    %v54 = vld [vmem:[%s1 + $0xa0] sm:$0xff]
    %v55 = vld [vmem:[%s1 + $0xa8] sm:$0xff]
    %v56 = vld [vmem:[%s1 + $0xb0] sm:$0xff]
    %v57 = vld [vmem:[%s1 + $0xb8] sm:$0xff]
    %v58 = vld [vmem:[%s1 + $0xc0] sm:$0xff]
    %v59 = vld [vmem:[%s1 + $0xc8] sm:$0xff]
    %v60 = vld [vmem:[%s1 + $0xd0] sm:$0xff]
    %v61 = vld [vmem:[%s1 + $0xd8] sm:$0xff]
    %v62 = vld [vmem:[%s1 + $0xe0] sm:$0xff]
    %v63 = vld [vmem:[%s1 + $0xe8] sm:$0xff]
    %v64 = vld [vmem:[%s1 + $0xf0] sm:$0xff]
    %v65 = vld [vmem:[%s1 + $0xf8] sm:$0xff]
    %v98 = vunpack.c.l.b16 %v34
    %v99 = vunpack.c.h.b16 %v34
    %v100 = vunpack.c.l.b16 %v35
    %v101 = vunpack.c.h.b16 %v35
    %v102 = vunpack.c.l.b16 %v36
    %v103 = vunpack.c.h.b16 %v36
    %v104 = vunpack.c.l.b16 %v37
    %v105 = vunpack.c.h.b16 %v37
    %v106 = vunpack.c.l.b16 %v38
    %v107 = vunpack.c.h.b16 %v38
    %v108 = vunpack.c.l.b16 %v39
    %v109 = vunpack.c.h.b16 %v39
    %v110 = vunpack.c.l.b16 %v40
    %v111 = vunpack.c.h.b16 %v40
    %v112 = vunpack.c.l.b16 %v41
    %v113 = vunpack.c.h.b16 %v41
    %v114 = vunpack.c.l.b16 %v42
    %v115 = vunpack.c.h.b16 %v42
    %v116 = vunpack.c.l.b16 %v43
    %v117 = vunpack.c.h.b16 %v43
    %v118 = vunpack.c.l.b16 %v44
    %v119 = vunpack.c.h.b16 %v44
    %v120 = vunpack.c.l.b16 %v45
    %v121 = vunpack.c.h.b16 %v45
    %v122 = vunpack.c.l.b16 %v46
    %v123 = vunpack.c.h.b16 %v46
    %v124 = vunpack.c.l.b16 %v47
    %v125 = vunpack.c.h.b16 %v47
    %v126 = vunpack.c.l.b16 %v48
    %v127 = vunpack.c.h.b16 %v48
    %v128 = vunpack.c.l.b16 %v49
    %v129 = vunpack.c.h.b16 %v49
    %v130 = vunpack.c.l.b16 %v50
    %v131 = vunpack.c.h.b16 %v50
    %v132 = vunpack.c.l.b16 %v51
    %v133 = vunpack.c.h.b16 %v51
    %v134 = vunpack.c.l.b16 %v52
    %v135 = vunpack.c.h.b16 %v52
    %v136 = vunpack.c.l.b16 %v53
    %v137 = vunpack.c.h.b16 %v53
    %v138 = vunpack.c.l.b16 %v54
    %v139 = vunpack.c.h.b16 %v54
    %v140 = vunpack.c.l.b16 %v55
    %v141 = vunpack.c.h.b16 %v55
    %v142 = vunpack.c.l.b16 %v56
    %v143 = vunpack.c.h.b16 %v56
    %v144 = vunpack.c.l.b16 %v57
    %v145 = vunpack.c.h.b16 %v57
    %v146 = vunpack.c.l.b16 %v58
    %v147 = vunpack.c.h.b16 %v58
    %v148 = vunpack.c.l.b16 %v59
    %v149 = vunpack.c.h.b16 %v59
    %v150 = vunpack.c.l.b16 %v60
    %v151 = vunpack.c.h.b16 %v60
    %v152 = vunpack.c.l.b16 %v61
    %v153 = vunpack.c.h.b16 %v61
    %v154 = vunpack.c.l.b16 %v62
    %v155 = vunpack.c.h.b16 %v62
    %v156 = vunpack.c.l.b16 %v63
    %v157 = vunpack.c.h.b16 %v63
    %v158 = vunpack.c.l.b16 %v64
    %v159 = vunpack.c.h.b16 %v64
    %v160 = vunpack.c.l.b16 %v65
    %v161 = vunpack.c.h.b16 %v65
    %v162 = vpack.c.b16 %v102, %v98
    %v163 = vpack.c.b16 %v103, %v99
    %v164 = vpack.c.b16 %v104, %v100
    %v165 = vpack.c.b16 %v105, %v101
    %v166 = vpack.c.b16 %v110, %v106
    %v167 = vpack.c.b16 %v111, %v107
    %v168 = vpack.c.b16 %v112, %v108
    %v169 = vpack.c.b16 %v113, %v109
    %v170 = vpack.c.b16 %v118, %v114
    %v171 = vpack.c.b16 %v119, %v115
    %v172 = vpack.c.b16 %v120, %v116
    %v173 = vpack.c.b16 %v121, %v117
    %v174 = vpack.c.b16 %v126, %v122
    %v175 = vpack.c.b16 %v127, %v123
    %v176 = vpack.c.b16 %v128, %v124
    %v177 = vpack.c.b16 %v129, %v125
    %v178 = vpack.c.b16 %v134, %v130
    %v179 = vpack.c.b16 %v135, %v131
    %v180 = vpack.c.b16 %v136, %v132
    %v181 = vpack.c.b16 %v137, %v133
    %v182 = vpack.c.b16 %v142, %v138
    %v183 = vpack.c.b16 %v143, %v139
    %v184 = vpack.c.b16 %v144, %v140
    %v185 = vpack.c.b16 %v145, %v141
    %v186 = vpack.c.b16 %v150, %v146
    %v187 = vpack.c.b16 %v151, %v147
    %v188 = vpack.c.b16 %v152, %v148
    %v189 = vpack.c.b16 %v153, %v149
    %v190 = vpack.c.b16 %v158, %v154
    %v191 = vpack.c.b16 %v159, %v155
    %v192 = vpack.c.b16 %v160, %v156
    %v193 = vpack.c.b16 %v161, %v157
    %226 = vmatpush.bf16.msra.mxu0 %v190
    %227 = vmatpush.bf16.msra.mxu0 %v186
    %228 = vmatpush.bf16.msra.mxu0 %v182
    %229 = vmatpush.bf16.msra.mxu0 %v178
    %230 = vmatpush.bf16.msra.mxu0 %v174
    %231 = vmatpush.bf16.msra.mxu0 %v170
    %232 = vmatpush.bf16.msra.mxu0 %v166
    %233 = vmatpush.bf16.msra.mxu0 %v162
    %234 = vmatmul.bf16.gmra.mxu0 %v33
    %v235 = vpop.f32.mrf.mxu0
    %v236 = vadd.f32 0.0, %v235
    %v237 = vpop.f32.mrf.mxu0
    %238 = vdwg.mxu0
    %239 = vmatpush.bf16.msra.mxu0 %v191
    %240 = vmatpush.bf16.msra.mxu0 %v187
    %241 = vmatpush.bf16.msra.mxu0 %v183
    %242 = vmatpush.bf16.msra.mxu0 %v179
    %243 = vmatpush.bf16.msra.mxu0 %v175
    %244 = vmatpush.bf16.msra.mxu0 %v171
    %245 = vmatpush.bf16.msra.mxu0 %v167
    %246 = vmatpush.bf16.msra.mxu0 %v163
    %247 = vmatmul.bf16.gmra.mxu0 %v33
    %v248 = vpop.f32.mrf.mxu0
    %v249 = vadd.f32 0.0, %v248
    %v250 = vpop.f32.mrf.mxu0
    %251 = vdwg.mxu0
    %252 = vmatpush.bf16.msra.mxu0 %v192
    %253 = vmatpush.bf16.msra.mxu0 %v188
    %254 = vmatpush.bf16.msra.mxu0 %v184
    %255 = vmatpush.bf16.msra.mxu0 %v180
    %256 = vmatpush.bf16.msra.mxu0 %v176
    %257 = vmatpush.bf16.msra.mxu0 %v172
    %258 = vmatpush.bf16.msra.mxu0 %v168
    %259 = vmatpush.bf16.msra.mxu0 %v164
    %260 = vmatmul.bf16.gmra.mxu0 %v33
    %v261 = vpop.f32.mrf.mxu0
    %v262 = vadd.f32 0.0, %v261
    %v263 = vpop.f32.mrf.mxu0
    %264 = vdwg.mxu0
    %265 = vmatpush.bf16.msra.mxu0 %v193
    %266 = vmatpush.bf16.msra.mxu0 %v189
    %267 = vmatpush.bf16.msra.mxu0 %v185
    %268 = vmatpush.bf16.msra.mxu0 %v181
    %269 = vmatpush.bf16.msra.mxu0 %v177
    %270 = vmatpush.bf16.msra.mxu0 %v173
    %271 = vmatpush.bf16.msra.mxu0 %v169
    %272 = vmatpush.bf16.msra.mxu0 %v165
    %273 = vmatmul.bf16.gmra.mxu0 %v33
    %v274 = vpop.f32.mrf.mxu0
    %v275 = vadd.f32 0.0, %v274
    %v276 = vpop.f32.mrf.mxu0
    %277 = vdwg.mxu0
    %v278 = vadd.f32 %v29, %v236
    %v279 = vadd.f32 %v30, %v249
    %v280 = vadd.f32 %v31, %v262
    %v281 = vadd.f32 %v32, %v275
    %282 = vst [vmem:[#allocation2] sm:$0xff] %v278
    %283 = vst [vmem:[#allocation2 + $0x8] sm:$0xff] %v279
    %284 = vst [vmem:[#allocation2 + $0x10] sm:$0xff] %v280
    %285 = vst [vmem:[#allocation2 + $0x18] sm:$0xff] %v281
    // Predicated region
    $region26: #{nature_cnn_forward.7} parent=1 // pred_check
      %p286 = pneg %p21
    $region27: #{nature_cnn_forward.7} parent=1 // pred_check_branch
      %288 = sbr.rel (%p286) target = $region29
    $region28: #{nature_cnn_forward.7} parent=1 // pred_region
      %v289 = vld [vmem:[#allocation2] sm:$0xff]
      %v290 = vld [vmem:[#allocation2 + $0x8] sm:$0xff]
      %v291 = vld [vmem:[#allocation2 + $0x10] sm:$0xff]
      %v292 = vld [vmem:[#allocation2 + $0x18] sm:$0xff]
      %v293 = vld [vmem:[%s2] sm:$0xf]
      %v295 = vperm.slane %v293, 0
      %v296 = vperm.slane %v293, 1
      %v297 = vperm.slane %v293, 2
      %v298 = vperm.slane %v293, 3
      %v303 = vadd.f32 %v289, %v295
      %v304 = vadd.f32 %v290, %v296
      %v305 = vadd.f32 %v291, %v297
      %v306 = vadd.f32 %v292, %v298
      %v307 = vmax.f32 %v303, 0.0
      %v308 = vmax.f32 %v304, 0.0
      %v309 = vmax.f32 %v305, 0.0
      %v310 = vmax.f32 %v306, 0.0
      %v311 = vpack.c.bf16 %v307, %v307
      %v312 = vpack.c.bf16 %v308, %v308
      %v313 = vpack.c.bf16 %v309, %v309
      %v314 = vpack.c.bf16 %v310, %v310
      %v315 = vld [vmem:[%s3] sm:$0xf]
      %v316 = vld [vmem:[%s3 + $0x4] sm:$0xf]
      %v317 = vld [vmem:[%s3 + $0x8] sm:$0xf]
      %v318 = vld [vmem:[%s3 + $0xc] sm:$0xf]
      %v319 = vld [vmem:[%s3 + $0x10] sm:$0xf]
      %v320 = vld [vmem:[%s3 + $0x14] sm:$0xf]
      %v321 = vld [vmem:[%s3 + $0x18] sm:$0xf]
      %v322 = vld [vmem:[%s3 + $0x1c] sm:$0xf]
      %v323 = vld [vmem:[%s3 + $0x20] sm:$0xf]
      %v324 = vld [vmem:[%s3 + $0x24] sm:$0xf]
      %v325 = vld [vmem:[%s3 + $0x28] sm:$0xf]
      %v326 = vld [vmem:[%s3 + $0x2c] sm:$0xf]
      %v327 = vld [vmem:[%s3 + $0x30] sm:$0xf]
      %v328 = vld [vmem:[%s3 + $0x34] sm:$0xf]
      %v329 = vld [vmem:[%s3 + $0x38] sm:$0xf]
      %v330 = vld [vmem:[%s3 + $0x3c] sm:$0xf]
      %v331 = vld [vmem:[%s3 + $0x40] sm:$0xf]
      %v332 = vld [vmem:[%s3 + $0x44] sm:$0xf]
      %v333 = vld [vmem:[%s3 + $0x48] sm:$0xf]
      %v334 = vld [vmem:[%s3 + $0x4c] sm:$0xf]
      %v335 = vld [vmem:[%s3 + $0x50] sm:$0xf]
      %v336 = vld [vmem:[%s3 + $0x54] sm:$0xf]
      %v337 = vld [vmem:[%s3 + $0x58] sm:$0xf]
      %v338 = vld [vmem:[%s3 + $0x5c] sm:$0xf]
      %v339 = vld [vmem:[%s3 + $0x60] sm:$0xf]
      %v340 = vld [vmem:[%s3 + $0x64] sm:$0xf]
      %v341 = vld [vmem:[%s3 + $0x68] sm:$0xf]
      %v342 = vld [vmem:[%s3 + $0x6c] sm:$0xf]
      %v343 = vld [vmem:[%s3 + $0x70] sm:$0xf]
      %v344 = vld [vmem:[%s3 + $0x74] sm:$0xf]
      %v345 = vld [vmem:[%s3 + $0x78] sm:$0xf]
      %v346 = vld [vmem:[%s3 + $0x7c] sm:$0xf]
      %v347 = vld [vmem:[%s3 + $0x80] sm:$0xf]
      %v348 = vld [vmem:[%s3 + $0x84] sm:$0xf]
      %v349 = vld [vmem:[%s3 + $0x88] sm:$0xf]
      %v350 = vld [vmem:[%s3 + $0x8c] sm:$0xf]
      %v351 = vld [vmem:[%s3 + $0x90] sm:$0xf]
      %v352 = vld [vmem:[%s3 + $0x94] sm:$0xf]
      %v353 = vld [vmem:[%s3 + $0x98] sm:$0xf]
      %v354 = vld [vmem:[%s3 + $0x9c] sm:$0xf]
      %v355 = vld [vmem:[%s3 + $0xa0] sm:$0xf]
      %v356 = vld [vmem:[%s3 + $0xa4] sm:$0xf]
      %v357 = vld [vmem:[%s3 + $0xa8] sm:$0xf]
      %v358 = vld [vmem:[%s3 + $0xac] sm:$0xf]
      %v359 = vld [vmem:[%s3 + $0xb0] sm:$0xf]
      %v360 = vld [vmem:[%s3 + $0xb4] sm:$0xf]
      %v361 = vld [vmem:[%s3 + $0xb8] sm:$0xf]
      %v362 = vld [vmem:[%s3 + $0xbc] sm:$0xf]
      %v363 = vld [vmem:[%s3 + $0xc0] sm:$0xf]
      %v364 = vld [vmem:[%s3 + $0xc4] sm:$0xf]
      %v365 = vld [vmem:[%s3 + $0xc8] sm:$0xf]
      %v366 = vld [vmem:[%s3 + $0xcc] sm:$0xf]
      %v367 = vld [vmem:[%s3 + $0xd0] sm:$0xf]
      %v368 = vld [vmem:[%s3 + $0xd4] sm:$0xf]
      %v369 = vld [vmem:[%s3 + $0xd8] sm:$0xf]
      %v370 = vld [vmem:[%s3 + $0xdc] sm:$0xf]
      %v371 = vld [vmem:[%s3 + $0xe0] sm:$0xf]
      %v372 = vld [vmem:[%s3 + $0xe4] sm:$0xf]
      %v373 = vld [vmem:[%s3 + $0xe8] sm:$0xf]
      %v374 = vld [vmem:[%s3 + $0xec] sm:$0xf]
      %v375 = vld [vmem:[%s3 + $0xf0] sm:$0xf]
      %v376 = vld [vmem:[%s3 + $0xf4] sm:$0xf]
      %v377 = vld [vmem:[%s3 + $0xf8] sm:$0xf]
      %v378 = vld [vmem:[%s3 + $0xfc] sm:$0xf]
      %v379 = vld [vmem:[%s4] sm:$0x1]
      %v381 = vperm.slane %v379, 0
      %v447 = vunpack.c.l.b16 %v315
      %v448 = vunpack.c.l.b16 %v316
      %v449 = vunpack.c.l.b16 %v317
      %v450 = vunpack.c.l.b16 %v318
      %v451 = vunpack.c.l.b16 %v319
      %v452 = vunpack.c.l.b16 %v320
      %v453 = vunpack.c.l.b16 %v321
      %v454 = vunpack.c.l.b16 %v322
      %v455 = vunpack.c.l.b16 %v323
      %v456 = vunpack.c.l.b16 %v324
      %v457 = vunpack.c.l.b16 %v325
      %v458 = vunpack.c.l.b16 %v326
      %v459 = vunpack.c.l.b16 %v327
      %v460 = vunpack.c.l.b16 %v328
      %v461 = vunpack.c.l.b16 %v329
      %v462 = vunpack.c.l.b16 %v330
      %v463 = vunpack.c.l.b16 %v331
      %v464 = vunpack.c.l.b16 %v332
      %v465 = vunpack.c.l.b16 %v333
      %v466 = vunpack.c.l.b16 %v334
      %v467 = vunpack.c.l.b16 %v335
      %v468 = vunpack.c.l.b16 %v336
      %v469 = vunpack.c.l.b16 %v337
      %v470 = vunpack.c.l.b16 %v338
      %v471 = vunpack.c.l.b16 %v339
      %v472 = vunpack.c.l.b16 %v340
      %v473 = vunpack.c.l.b16 %v341
      %v474 = vunpack.c.l.b16 %v342
      %v475 = vunpack.c.l.b16 %v343
      %v476 = vunpack.c.l.b16 %v344
      %v477 = vunpack.c.l.b16 %v345
      %v478 = vunpack.c.l.b16 %v346
      %v479 = vunpack.c.l.b16 %v347
      %v480 = vunpack.c.l.b16 %v348
      %v481 = vunpack.c.l.b16 %v349
      %v482 = vunpack.c.l.b16 %v350
      %v483 = vunpack.c.l.b16 %v351
      %v484 = vunpack.c.l.b16 %v352
      %v485 = vunpack.c.l.b16 %v353
      %v486 = vunpack.c.l.b16 %v354
      %v487 = vunpack.c.l.b16 %v355
      %v488 = vunpack.c.l.b16 %v356
      %v489 = vunpack.c.l.b16 %v357
      %v490 = vunpack.c.l.b16 %v358
      %v491 = vunpack.c.l.b16 %v359
      %v492 = vunpack.c.l.b16 %v360
      %v493 = vunpack.c.l.b16 %v361
      %v494 = vunpack.c.l.b16 %v362
      %v495 = vunpack.c.l.b16 %v363
      %v496 = vunpack.c.l.b16 %v364
      %v497 = vunpack.c.l.b16 %v365
      %v498 = vunpack.c.l.b16 %v366
      %v499 = vunpack.c.l.b16 %v367
      %v500 = vunpack.c.l.b16 %v368
      %v501 = vunpack.c.l.b16 %v369
      %v502 = vunpack.c.l.b16 %v370
      %v503 = vunpack.c.l.b16 %v371
      %v504 = vunpack.c.l.b16 %v372
      %v505 = vunpack.c.l.b16 %v373
      %v506 = vunpack.c.l.b16 %v374
      %v507 = vunpack.c.l.b16 %v375
      %v508 = vunpack.c.l.b16 %v376
      %v509 = vunpack.c.l.b16 %v377
      %v510 = vunpack.c.l.b16 %v378
      %v511 = vpack.c.b16 %v448, %v447
      %v512 = vpack.c.b16 %v450, %v449
      %v513 = vpack.c.b16 %v452, %v451
      %v514 = vpack.c.b16 %v454, %v453
      %v515 = vpack.c.b16 %v456, %v455
      %v516 = vpack.c.b16 %v458, %v457
      %v517 = vpack.c.b16 %v460, %v459
      %v518 = vpack.c.b16 %v462, %v461
      %v519 = vpack.c.b16 %v464, %v463
      %v520 = vpack.c.b16 %v466, %v465
      %v521 = vpack.c.b16 %v468, %v467
      %v522 = vpack.c.b16 %v470, %v469
      %v523 = vpack.c.b16 %v472, %v471
      %v524 = vpack.c.b16 %v474, %v473
      %v525 = vpack.c.b16 %v476, %v475
      %v526 = vpack.c.b16 %v478, %v477
      %v527 = vpack.c.b16 %v480, %v479
      %v528 = vpack.c.b16 %v482, %v481
      %v529 = vpack.c.b16 %v484, %v483
      %v530 = vpack.c.b16 %v486, %v485
      %v531 = vpack.c.b16 %v488, %v487
      %v532 = vpack.c.b16 %v490, %v489
      %v533 = vpack.c.b16 %v492, %v491
      %v534 = vpack.c.b16 %v494, %v493
      %v535 = vpack.c.b16 %v496, %v495
      %v536 = vpack.c.b16 %v498, %v497
      %v537 = vpack.c.b16 %v500, %v499
      %v538 = vpack.c.b16 %v502, %v501
      %v539 = vpack.c.b16 %v504, %v503
      %v540 = vpack.c.b16 %v506, %v505
      %v541 = vpack.c.b16 %v508, %v507
      %v542 = vpack.c.b16 %v510, %v509
      %575 = vmatpush.bf16.msra.mxu0 %v518
      %576 = vmatpush.bf16.msra.mxu0 %v517
      %577 = vmatpush.bf16.msra.mxu0 %v516
      %578 = vmatpush.bf16.msra.mxu0 %v515
      %579 = vmatpush.bf16.msra.mxu0 %v514
      %580 = vmatpush.bf16.msra.mxu0 %v513
      %581 = vmatpush.bf16.msra.mxu0 %v512
      %582 = vmatpush.bf16.msra.mxu0 %v511
      %583 = vmatmul.bf16.gmra.mxu0 %v311
      %v584 = vpop.f32.mrf.mxu0
      %v585 = vadd.f32 %v381, %v584
      %v586 = vpop.f32.mrf.mxu0
      %587 = vdwg.mxu0
      %588 = vmatpush.bf16.msra.mxu0 %v526
      %589 = vmatpush.bf16.msra.mxu0 %v525
      %590 = vmatpush.bf16.msra.mxu0 %v524
      %591 = vmatpush.bf16.msra.mxu0 %v523
      %592 = vmatpush.bf16.msra.mxu0 %v522
      %593 = vmatpush.bf16.msra.mxu0 %v521
      %594 = vmatpush.bf16.msra.mxu0 %v520
      %595 = vmatpush.bf16.msra.mxu0 %v519
      %596 = vmatmul.bf16.gmra.mxu0 %v312
      %v597 = vpop.f32.mrf.mxu0
      %v598 = vadd.f32 %v585, %v597
      %v599 = vpop.f32.mrf.mxu0
      %600 = vdwg.mxu0
      %601 = vmatpush.bf16.msra.mxu0 %v534
      %602 = vmatpush.bf16.msra.mxu0 %v533
      %603 = vmatpush.bf16.msra.mxu0 %v532
      %604 = vmatpush.bf16.msra.mxu0 %v531
      %605 = vmatpush.bf16.msra.mxu0 %v530
      %606 = vmatpush.bf16.msra.mxu0 %v529
      %607 = vmatpush.bf16.msra.mxu0 %v528
      %608 = vmatpush.bf16.msra.mxu0 %v527
      %609 = vmatmul.bf16.gmra.mxu0 %v313
      %v610 = vpop.f32.mrf.mxu0
      %v611 = vadd.f32 %v598, %v610
      %v612 = vpop.f32.mrf.mxu0
      %613 = vdwg.mxu0
      %614 = vmatpush.bf16.msra.mxu0 %v542
      %615 = vmatpush.bf16.msra.mxu0 %v541
      %616 = vmatpush.bf16.msra.mxu0 %v540
      %617 = vmatpush.bf16.msra.mxu0 %v539
      %618 = vmatpush.bf16.msra.mxu0 %v538
      %619 = vmatpush.bf16.msra.mxu0 %v537
      %620 = vmatpush.bf16.msra.mxu0 %v536
      %621 = vmatpush.bf16.msra.mxu0 %v535
      %622 = vmatmul.bf16.gmra.mxu0 %v314
      %v623 = vpop.f32.mrf.mxu0
      %v624 = vadd.f32 %v611, %v623
      %v625 = vpop.f32.mrf.mxu0
      %626 = vdwg.mxu0
      %627 = vst [vmem:[#allocation3] sm:$0xff] %v624
    $region29: #{nature_cnn_forward.7} parent=1 // pred_fallthru
      _
    // Predicated region
    $region30: #{nature_cnn_forward.7} parent=1 // pred_check
      _
    $region31: #{nature_cnn_forward.7} parent=1 // pred_check_branch
      %629 = sbr.rel (0) target = $region33
    $region32: #{nature_cnn_forward.7} parent=1 // pred_region
      %631 = vsyncadd [#allocation4], 0
      %s633 = sshll.u32 [#allocation3], 4
      %s634 = int_to_ptr.vmem [resolvable:$true] %s633
      %s635 = sshll.u32 %s5, 4
      %s636 = int_to_ptr.hbm [resolvable:$true] %s635
      %638 = dma.vmem_to_hbm [thread:$0]  %s634, 128, %s636, [#allocation4]
    $region33: #{nature_cnn_forward.7} parent=1 // pred_fallthru
      _
    // Predicated region
    $region34: #{nature_cnn_forward.7} parent=1 // pred_check
      _
    $region35: #{nature_cnn_forward.7} parent=1 // pred_check_branch
      %640 = sbr.rel (0) target = $region37
    $region36: #{nature_cnn_forward.7} parent=1 // pred_region
      %642 = dma.done [#allocation4], 128
    $region37: #{nature_cnn_forward.7} parent=1 // pred_fallthru
      _
    %643 = vsyncpa [#allocation4], 1

</llo_original>
